<compile_context>
chip_gen: v7x
topology: tpu7x:2x2x1
jax: 0.10.0
libtpu: 0.0.40
codegen_flags: <defaults>
</compile_context>

<pallas_src>
import math

import jax
import jax.numpy as jnp
from jax import lax
from jax.experimental import pallas as pl
from jax.experimental.pallas import tpu as pltpu

LANES = 128                      # vreg lane width
CHUNK_ROWS = 512                 # rows per in-kernel compute chunk
ROW_TILE_MAX = 8192              # rows per DMA tile (24 MiB f32 double-buffered)
NUM_CORES = 2                    # leading grid axis (2-TC split on v7x; harmless elsewhere)
VMEM_LIMIT_BYTES = 40 * 1024 * 1024
_HALF_LOG_2PI = 0.5 * math.log(2.0 * math.pi)


def _round_up(x, m):
    return ((x + m - 1) // m) * m


def _cdiv(a, b):
    return -(-a // b)


def elbo_loss_mse(loc, scale, target_y):
    """Returns (loss, log_likelihood, kld=None, mse) matching the PyTorch module.

    Inputs may be f32 or bf16 (streamed in native dtype, accumulated in f32).
    """
    B, T, D = target_y.shape
    n_total = B * T * D

    # ---- lane-dense flatten: zero-copy when possible ----------------------
    if n_total % LANES == 0:
        pad = 0
        stored_rows = n_total // LANES
    else:
        padded_total = _round_up(n_total, 8 * LANES)   # pad only to vreg boundary
        pad = padded_total - n_total
        stored_rows = padded_total // LANES

    def _flat(x, fill):
        if pad == 0:
            return x.reshape(stored_rows, LANES)       # zero-copy reshape
        f = x.reshape(-1)
        f = jnp.concatenate([f, jnp.full((pad,), fill, dtype=f.dtype)])
        return f.reshape(stored_rows, LANES)

    loc2 = _flat(loc, 0)          # neutral padding -> contributes 0 to both sums
    scale2 = _flat(scale, 1)      # log(1)=0, 1/1=1
    y2 = _flat(target_y, 0)

    # ---- tiling ------------------------------------------------------------
    rows_per_core = _cdiv(stored_rows, NUM_CORES)
    row_tile = min(ROW_TILE_MAX, _round_up(rows_per_core, CHUNK_ROWS))
    assert row_tile % CHUNK_ROWS == 0
    chunk = CHUNK_ROWS
    n_chunks = row_tile // chunk

    total_blocks = _cdiv(stored_rows, row_tile)
    tiles_per_core = _cdiv(total_blocks, NUM_CORES)
    n_full = stored_rows // row_tile                 # fully-valid blocks
    has_partial = (stored_rows % row_tile) != 0      # one ragged tail block
    last_blk = total_blocks - 1

    # ---- kernel ------------------------------------------------------------
    def kernel(loc_ref, scale_ref, y_ref, lp_ref, se_ref):
        c = pl.program_id(0)
        i = pl.program_id(1)
        blk = c * tiles_per_core + i                 # logical (unclamped) block index

        @pl.when(i == 0)
        def _init():
            lp_ref[...] = jnp.zeros_like(lp_ref)
            se_ref[...] = jnp.zeros_like(se_ref)

        def _accumulate(masked):
            if masked:
                base_row = lax.broadcasted_iota(jnp.int32, (chunk, LANES), 0)
            for j in range(n_chunks):                # static unrolled chunk loop
                r0 = j * chunk
                sl = pl.ds(r0, chunk)
                lc = loc_ref[sl, :].astype(jnp.float32)
                sc = scale_ref[sl, :].astype(jnp.float32)
                yy = y_ref[sl, :].astype(jnp.float32)
                if masked:
                    # Neutralize garbage rows of the partial tail block BEFORE
                    # log/reciprocal so NaN/Inf never enters the accumulators.
                    row = blk * row_tile + r0 + base_row
                    valid = row < stored_rows
                    lc = jnp.where(valid, lc, 0.0)
                    yy = jnp.where(valid, yy, 0.0)
                    sc = jnp.where(valid, sc, 1.0)
                diff = yy - lc
                sq = diff * diff
                inv_var = pl.reciprocal(sc * sc, approx=False)
                # Gaussian log-prob WITHOUT -0.5*log(2*pi) (re-added in wrapper).
                lp = -0.5 * sq * inv_var - jnp.log(sc)
                # Two-stage pure-VPU reduction: 4 independent vreg accumulator
                # chains, then 3 adds to fold into the resident (8,128) block.
                lp4 = lp.reshape(chunk // 32, 32, LANES).sum(axis=0)
                sq4 = sq.reshape(chunk // 32, 32, LANES).sum(axis=0)
                lp_ref[...] += lp4.reshape(4, 8, LANES).sum(axis=0)
                se_ref[...] += sq4.reshape(4, 8, LANES).sum(axis=0)

        if n_full > 0:
            @pl.when(blk < n_full)                   # hot path: no masking
            def _full_blocks():
                _accumulate(masked=False)

        if has_partial:
            @pl.when(blk == n_full)                  # single ragged tail block
            def _tail_block():
                _accumulate(masked=True)
        # Blocks with blk beyond the last real block (clamped in the index_map
        # for core balancing) skip compute entirely and contribute nothing.

    def in_index_map(c, i):
        # Clamp so an overhanging core never DMAs out of bounds; its compute is
        # skipped in-kernel via the blk guards above.
        return (jnp.minimum(c * tiles_per_core + i, last_blk), 0)

    in_spec = pl.BlockSpec((row_tile, LANES), in_index_map)
    out_spec = pl.BlockSpec((None, 8, LANES), lambda c, i: (c, 0, 0))

    lp_part, se_part = pl.pallas_call(
        kernel,
        out_shape=(
            jax.ShapeDtypeStruct((NUM_CORES, 8, LANES), jnp.float32),
            jax.ShapeDtypeStruct((NUM_CORES, 8, LANES), jnp.float32),
        ),
        grid_spec=pltpu.PrefetchScalarGridSpec(
            num_scalar_prefetch=0,
            grid=(NUM_CORES, tiles_per_core),
            in_specs=[in_spec, in_spec, in_spec],
            out_specs=(out_spec, out_spec),
        ),
        compiler_params=pltpu.CompilerParams(
            dimension_semantics=("parallel", "arbitrary"),
            vmem_limit_bytes=VMEM_LIMIT_BYTES,
        ),
    )(loc2, scale2, y2)

    lp_sum = jnp.sum(lp_part)
    se_sum = jnp.sum(se_part)

    # Re-add hoisted constant for the real (non-pad) elements; mean over batch.
    log_likelihood = (lp_sum - n_total * _HALF_LOG_2PI) / B
    loss = -log_likelihood
    mse = se_sum / n_total                 # F.mse_loss(..., reduction='mean')
    kld = None                             # elbo_loss_mse always passes None dists
    return loss, log_likelihood, kld, mse


def _reference(loc, scale, target_y):
    lp = (-0.5 * (target_y - loc) ** 2 / (scale ** 2)
          - jnp.log(scale) - 0.5 * jnp.log(2.0 * jnp.pi))
    ll = lp.sum(-1).sum(-1).mean()
    mse = jnp.mean((loc - target_y) ** 2)
    return -ll, ll, mse


if __name__ == "__main__":
    key = jax.random.PRNGKey(0)

    # Case 1: B*T*D divisible by 128 -> zero-copy lane-dense path.
    B, T, D = 2, 8, 32
    k1, k2, k3, key = jax.random.split(key, 4)
    loc = jax.random.normal(k1, (B, T, D), dtype=jnp.float32)
    scale = jax.nn.softplus(jax.random.normal(k2, (B, T, D), dtype=jnp.float32)) + 1e-3
    target_y = jax.random.normal(k3, (B, T, D), dtype=jnp.float32)

    loss, ll, kld, mse = elbo_loss_mse(loc, scale, target_y)
    jax.block_until_ready((loss, ll, mse))
    loss_r, ll_r, mse_r = _reference(loc, scale, target_y)
    assert jnp.allclose(ll, ll_r, rtol=1e-5, atol=1e-5)
    assert jnp.allclose(loss, loss_r, rtol=1e-5, atol=1e-5)
    assert jnp.allclose(mse, mse_r, rtol=1e-5, atol=1e-5)
    assert kld is None

    # Case 2: B*T*D NOT divisible by 128 -> minimal neutral pad + in-kernel mask.
    B2, T2, D2 = 2, 8, 25
    k1, k2, k3, key = jax.random.split(key, 4)
    loc2 = jax.random.normal(k1, (B2, T2, D2), dtype=jnp.float32)
    scale2 = jax.nn.softplus(jax.random.normal(k2, (B2, T2, D2), dtype=jnp.float32)) + 1e-3
    y2 = jax.random.normal(k3, (B2, T2, D2), dtype=jnp.float32)

    loss2, ll2, kld2, mse2 = elbo_loss_mse(loc2, scale2, y2)
    jax.block_until_ready((loss2, ll2, mse2))
    loss2_r, ll2_r, mse2_r = _reference(loc2, scale2, y2)
    assert jnp.allclose(ll2, ll2_r, rtol=1e-5, atol=1e-5)
    assert jnp.allclose(loss2, loss2_r, rtol=1e-5, atol=1e-5)
    assert jnp.allclose(mse2, mse2_r, rtol=1e-5, atol=1e-5)
    assert kld2 is None

    print("KERNEL_OK")
</pallas_src>

<mosaic_0001>
module attributes {stable_mosaic.version = 11 : i64} {
  func.func @kernel(%arg0: i32, %arg1: i32, %arg2: memref<512x128xf32, #tpu.memory_space<vmem>>, %arg3: memref<512x128xf32, #tpu.memory_space<vmem>>, %arg4: memref<512x128xf32, #tpu.memory_space<vmem>>, %arg5: memref<1x8x128xf32, #tpu.memory_space<vmem>>, %arg6: memref<1x8x128xf32, #tpu.memory_space<vmem>>) attributes {dimension_semantics = [#tpu.dimension_semantics<parallel>, #tpu.dimension_semantics<arbitrary>], iteration_bounds = array<i64: 2, 1>, scalar_prefetch = 0 : i64, scratch_operands = 0 : i64, tpu.core_type = #tpu.core_type<tc>, window_params = [{transform_indices = @transform_0, window_bounds = array<i64: 512, 128>}, {transform_indices = @transform_1, window_bounds = array<i64: 512, 128>}, {transform_indices = @transform_2, window_bounds = array<i64: 512, 128>}, {transform_indices = @transform_3, window_bounds = array<i64: 1, 8, 128>}, {transform_indices = @transform_4, window_bounds = array<i64: 1, 8, 128>}]} {
    %c1_i32 = arith.constant 1 : i32
    %0 = arith.muli %arg0, %c1_i32 : i32
    %1 = arith.addi %0, %arg1 : i32
    %c0_i32 = arith.constant 0 : i32
    %2 = arith.cmpi eq, %arg1, %c0_i32 : i32
    %3 = arith.extui %2 : i1 to i32
    %c0_i32_0 = arith.constant 0 : i32
    %4 = arith.cmpi ne, %3, %c0_i32_0 : i32
    scf.if %4 {
      %cst = arith.constant 0.000000e+00 : f32
      %8 = vector.broadcast %cst : f32 to vector<8x128xf32>
      %c0 = arith.constant 0 : index
      %c0_3 = arith.constant 0 : index
      %c0_4 = arith.constant 0 : index
      %9 = vector.load %arg5[%c0, %c0_3, %c0_4] : memref<1x8x128xf32, #tpu.memory_space<vmem>>, vector<1x8x128xf32>
      %10 = vector.shape_cast %9 : vector<1x8x128xf32> to vector<8x128xf32>
      %11 = vector.shape_cast %8 : vector<8x128xf32> to vector<1x8x128xf32>
      tpu.vector_store %arg5[%c0, %c0_3, %c0_4], %11 {strides = array<i32>} : memref<1x8x128xf32, #tpu.memory_space<vmem>>, vector<1x8x128xf32>,
      %cst_5 = arith.constant 0.000000e+00 : f32
      %12 = vector.broadcast %cst_5 : f32 to vector<8x128xf32>
      %c0_6 = arith.constant 0 : index
      %c0_7 = arith.constant 0 : index
      %c0_8 = arith.constant 0 : index
      %13 = vector.load %arg6[%c0_6, %c0_7, %c0_8] : memref<1x8x128xf32, #tpu.memory_space<vmem>>, vector<1x8x128xf32>
      %14 = vector.shape_cast %13 : vector<1x8x128xf32> to vector<8x128xf32>
      %15 = vector.shape_cast %12 : vector<8x128xf32> to vector<1x8x128xf32>
      tpu.vector_store %arg6[%c0_6, %c0_7, %c0_8], %15 {strides = array<i32>} : memref<1x8x128xf32, #tpu.memory_space<vmem>>, vector<1x8x128xf32>,
    } else {
    }
    %c0_i32_1 = arith.constant 0 : i32
    %5 = arith.cmpi eq, %1, %c0_i32_1 : i32
    %6 = arith.extui %5 : i1 to i32
    %c0_i32_2 = arith.constant 0 : i32
    %7 = arith.cmpi ne, %6, %c0_i32_2 : i32
    scf.if %7 {
      %8 = tpu.iota {dimensions = array<i32: 0>} : vector<512x128xi32>
      %c0 = arith.constant 0 : index
      %c0_3 = arith.constant 0 : index
      %9 = vector.load %arg2[%c0, %c0_3] : memref<512x128xf32, #tpu.memory_space<vmem>>, vector<512x128xf32>
      %c0_4 = arith.constant 0 : index
      %c0_5 = arith.constant 0 : index
      %10 = vector.load %arg3[%c0_4, %c0_5] : memref<512x128xf32, #tpu.memory_space<vmem>>, vector<512x128xf32>
      %c0_6 = arith.constant 0 : index
      %c0_7 = arith.constant 0 : index
      %11 = vector.load %arg4[%c0_6, %c0_7] : memref<512x128xf32, #tpu.memory_space<vmem>>, vector<512x128xf32>
      %c512_i32 = arith.constant 512 : i32
      %12 = arith.muli %1, %c512_i32 : i32
      %c0_i32_8 = arith.constant 0 : i32
      %13 = arith.addi %12, %c0_i32_8 : i32
      %14 = vector.broadcast %13 : i32 to vector<512x128xi32>
      %15 = arith.addi %14, %8 : vector<512x128xi32>
      %c4_i32 = arith.constant 4 : i32
      %16 = vector.broadcast %c4_i32 : i32 to vector<512x128xi32>
      %17 = arith.cmpi slt, %15, %16 : vector<512x128xi32>
      %cst = arith.constant 0.000000e+00 : f32
      %18 = vector.broadcast %cst : f32 to vector<512x128xf32>
      %19 = arith.select %17, %9, %18 : vector<512x128xi1>, vector<512x128xf32>
      %cst_9 = arith.constant 0.000000e+00 : f32
      %20 = vector.broadcast %cst_9 : f32 to vector<512x128xf32>
      %21 = arith.select %17, %11, %20 : vector<512x128xi1>, vector<512x128xf32>
      %cst_10 = arith.constant 1.000000e+00 : f32
      %22 = vector.broadcast %cst_10 : f32 to vector<512x128xf32>
      %23 = arith.select %17, %10, %22 : vector<512x128xi1>, vector<512x128xf32>
      %24 = arith.subf %21, %19 : vector<512x128xf32>
      %25 = arith.mulf %24, %24 : vector<512x128xf32>
      %26 = arith.mulf %23, %23 : vector<512x128xf32>
      %27 = tpu.reciprocal %26 : vector<512x128xf32> -> vector<512x128xf32>
      %cst_11 = arith.constant -5.000000e-01 : f32
      %28 = vector.broadcast %cst_11 : f32 to vector<512x128xf32>
      %29 = arith.mulf %28, %25 : vector<512x128xf32>
      %30 = arith.mulf %29, %27 : vector<512x128xf32>
      %31 = math.log %23 : vector<512x128xf32>
      %32 = arith.subf %30, %31 : vector<512x128xf32>
      %33 = vector.shape_cast %32 : vector<512x128xf32> to vector<16x32x128xf32>
      %cst_12 = arith.constant dense<0.000000e+00> : vector<32x128xf32>
      %34 = vector.multi_reduction <add>, %33, %cst_12 [0] : vector<16x32x128xf32> to vector<32x128xf32>
      %35 = vector.shape_cast %25 : vector<512x128xf32> to vector<16x32x128xf32>
      %cst_13 = arith.constant dense<0.000000e+00> : vector<32x128xf32>
      %36 = vector.multi_reduction <add>, %35, %cst_13 [0] : vector<16x32x128xf32> to vector<32x128xf32>
      %c0_14 = arith.constant 0 : index
      %c0_15 = arith.constant 0 : index
      %c0_16 = arith.constant 0 : index
      %37 = vector.load %arg5[%c0_14, %c0_15, %c0_16] : memref<1x8x128xf32, #tpu.memory_space<vmem>>, vector<1x8x128xf32>
      %38 = vector.shape_cast %37 : vector<1x8x128xf32> to vector<8x128xf32>
      %39 = vector.shape_cast %34 : vector<32x128xf32> to vector<4x8x128xf32>
      %cst_17 = arith.constant dense<0.000000e+00> : vector<8x128xf32>
      %40 = vector.multi_reduction <add>, %39, %cst_17 [0] : vector<4x8x128xf32> to vector<8x128xf32>
      %41 = arith.addf %38, %40 : vector<8x128xf32>
      %c0_18 = arith.constant 0 : index
      %c0_19 = arith.constant 0 : index
      %c0_20 = arith.constant 0 : index
      %42 = vector.load %arg5[%c0_18, %c0_19, %c0_20] : memref<1x8x128xf32, #tpu.memory_space<vmem>>, vector<1x8x128xf32>
      %43 = vector.shape_cast %42 : vector<1x8x128xf32> to vector<8x128xf32>
      %44 = vector.shape_cast %41 : vector<8x128xf32> to vector<1x8x128xf32>
      tpu.vector_store %arg5[%c0_18, %c0_19, %c0_20], %44 {strides = array<i32>} : memref<1x8x128xf32, #tpu.memory_space<vmem>>, vector<1x8x128xf32>,
      %c0_21 = arith.constant 0 : index
      %c0_22 = arith.constant 0 : index
      %c0_23 = arith.constant 0 : index
      %45 = vector.load %arg6[%c0_21, %c0_22, %c0_23] : memref<1x8x128xf32, #tpu.memory_space<vmem>>, vector<1x8x128xf32>
      %46 = vector.shape_cast %45 : vector<1x8x128xf32> to vector<8x128xf32>
      %47 = vector.shape_cast %36 : vector<32x128xf32> to vector<4x8x128xf32>
      %cst_24 = arith.constant dense<0.000000e+00> : vector<8x128xf32>
      %48 = vector.multi_reduction <add>, %47, %cst_24 [0] : vector<4x8x128xf32> to vector<8x128xf32>
      %49 = arith.addf %46, %48 : vector<8x128xf32>
      %c0_25 = arith.constant 0 : index
      %c0_26 = arith.constant 0 : index
      %c0_27 = arith.constant 0 : index
      %50 = vector.load %arg6[%c0_25, %c0_26, %c0_27] : memref<1x8x128xf32, #tpu.memory_space<vmem>>, vector<1x8x128xf32>
      %51 = vector.shape_cast %50 : vector<1x8x128xf32> to vector<8x128xf32>
      %52 = vector.shape_cast %49 : vector<8x128xf32> to vector<1x8x128xf32>
      tpu.vector_store %arg6[%c0_25, %c0_26, %c0_27], %52 {strides = array<i32>} : memref<1x8x128xf32, #tpu.memory_space<vmem>>, vector<1x8x128xf32>,
    } else {
    }
    return
  }
  func.func @transform_0(%arg0: i32, %arg1: i32) -> (i32, i32) {
    %c1_i32 = arith.constant 1 : i32
    %0 = arith.muli %arg0, %c1_i32 : i32
    %1 = arith.addi %0, %arg1 : i32
    %c0_i32 = arith.constant 0 : i32
    %2 = arith.minsi %1, %c0_i32 : i32
    %c0_i32_0 = arith.constant 0 : i32
    %c0_i32_1 = arith.constant 0 : i32
    return %2, %c0_i32_0 : i32, i32
  }
  func.func @transform_1(%arg0: i32, %arg1: i32) -> (i32, i32) {
    %c1_i32 = arith.constant 1 : i32
    %0 = arith.muli %arg0, %c1_i32 : i32
    %1 = arith.addi %0, %arg1 : i32
    %c0_i32 = arith.constant 0 : i32
    %2 = arith.minsi %1, %c0_i32 : i32
    %c0_i32_0 = arith.constant 0 : i32
    %c0_i32_1 = arith.constant 0 : i32
    return %2, %c0_i32_0 : i32, i32
  }
  func.func @transform_2(%arg0: i32, %arg1: i32) -> (i32, i32) {
    %c1_i32 = arith.constant 1 : i32
    %0 = arith.muli %arg0, %c1_i32 : i32
    %1 = arith.addi %0, %arg1 : i32
    %c0_i32 = arith.constant 0 : i32
    %2 = arith.minsi %1, %c0_i32 : i32
    %c0_i32_0 = arith.constant 0 : i32
    %c0_i32_1 = arith.constant 0 : i32
    return %2, %c0_i32_0 : i32, i32
  }
  func.func @transform_3(%arg0: i32, %arg1: i32) -> (i32, i32, i32) {
    %c0_i32 = arith.constant 0 : i32
    %c0_i32_0 = arith.constant 0 : i32
    %c0_i32_1 = arith.constant 0 : i32
    return %arg0, %c0_i32, %c0_i32_0 : i32, i32, i32
  }
  func.func @transform_4(%arg0: i32, %arg1: i32) -> (i32, i32, i32) {
    %c0_i32 = arith.constant 0 : i32
    %c0_i32_0 = arith.constant 0 : i32
    %c0_i32_1 = arith.constant 0 : i32
    return %arg0, %c0_i32, %c0_i32_0 : i32, i32, i32
  }
}

</mosaic_0001>

<llo_original>
// kernel: tpu_custom_call.1
$region0: #{tpu_custom_call.1}
  #allocation0 [shape = 'u32[]', space=smem, size = 0x4, offset = 0x4, fixed_abs, tag = 'smem constant byte address 0x4 - core index']
  #allocation1 [shape = 'u32[144,128]{1,0:T(1,128)}', space=vmem, size = 0x12000, scoped, tag = 'internal scratch']
  %s0 = inlined_call_operand.hbm [shape: f32[4,128], index: 0, kind: input, shape index: {}]
  %s1 = inlined_call_operand.hbm [shape: f32[4,128], index: 1, kind: input, shape index: {}]
  %s2 = inlined_call_operand.vmem [shape: f32[4,128], index: 2, kind: input, shape index: {}]
  %s3 = inlined_call_operand.hbm [shape: f32[2,8,128], index: 3, kind: output, shape index: {0}]
  %s4 = inlined_call_operand.hbm [shape: f32[2,8,128], index: 4, kind: output, shape index: {1}]
  %5 = xla_tuple %s3, %s4
  %s6 = sld [smem:[#allocation0]]
  $region69: #{tpu_custom_call.1} parent=0
    _
  %s8 = ssub.s32 1, %s6
  %s9 = scalar_select 0, %s8, %s6
  $region1: #{tpu_custom_call.1} parent=0
    #allocation2 [shape = 'u8[524288]{0}', space=vmem, size = 0x80000, scoped, tag = 'input window, operand 0']
    #allocation3 [shape = 's32[2]{0}', space=sflag, size = 0x8, scoped, tag = 'scoped memory for tpu_custom_call.1']
    #allocation4 [shape = 's32[2]{0}', space=sflag, size = 0x8, scoped, tag = 'scoped memory for tpu_custom_call.1']
    #allocation5 [shape = 'u8[524288]{0}', space=vmem, size = 0x80000, scoped, tag = 'input window, operand 1']
    #allocation6 [shape = 's32[2]{0}', space=sflag, size = 0x8, scoped, tag = 'scoped memory for tpu_custom_call.1']
    #allocation7 [shape = 'u8[8192]{0}', space=vmem, size = 0x2000, scoped, tag = 'output window, operand 0']
    #allocation8 [shape = 'u8[8192]{0}', space=vmem, size = 0x2000, scoped, tag = 'output window, operand 1']
    #allocation9 [shape = 's32[2]{0}', space=sflag, size = 0x8, scoped, tag = 'scoped memory for tpu_custom_call.1']
    %10 = vsyncpa [#allocation3], 0
    %s11 = scalar_lea.sflag [#allocation3], 1
    %12 = vsyncpa %s11, 0
    %13 = vsyncpa [#allocation6], 0
    %s14 = scalar_lea.sflag [#allocation6], 1
    %15 = vsyncpa %s14, 0
    %16 = vsyncpa [#allocation4], 0
    %s17 = scalar_lea.sflag [#allocation4], 1
    %18 = vsyncpa %s17, 0
    %19 = vsyncpa [#allocation9], 0
    %s20 = scalar_lea.sflag [#allocation9], 1
    %21 = vsyncpa %s20, 0
    loop: start=0, step=1, limit=4
    $region2: #{tpu_custom_call.1} parent=1 // loop_pre_header
      _
    $region3: #{tpu_custom_call.1} parent=1 // loop_header
      %s23 = sphi 0, %s27
      %p24 = scmp.ge.s32.totalorder %s23, 4
      %s30 = sphi 0, %s42
      %s31 = sphi 0, %s38
      %s32 = sphi 0, %s30
      %s33 = sphi 0, %s31
      %s34 = sphi 0, %s32
      %s35 = sphi 0, %s33
      %s51 = sphi 0, %s53
      %s54 = sphi 0, %s51
      %s55 = sphi 0, %s54
      %s71 = sphi 0, %s55
      %s83 = sphi 0, %s85
      %s86 = sphi 0, %s83
      %s87 = sphi 0, %s86
      %s103 = sphi 0, %s87
      %s115 = sphi 0, %s117
      %s118 = sphi 0, %s115
      %s119 = sphi 0, %s118
      %s135 = sphi 0, %s119
      %s141 = sphi 0, %s143
      %s144 = sphi 0, %s141
      %s145 = sphi 0, %s144
      %s161 = sphi 0, %s145
      %s167 = sphi 0, %s169
      %s170 = sphi 0, %s167
      %s171 = sphi 0, %s170
      %s187 = sphi 0, %s171
    $region4: #{tpu_custom_call.1} parent=1 // loop_header_branch
      %26 = sbr.rel (%p24) target = $region8
    $region5: #{tpu_custom_call.1} parent=1 // loop_body
      %s28 = ssub.s32 %s23, 1
      %s29 = ssub.s32 %s23, 2
      %s36 = sadd.s32 1, %s31
      %p37 = scmp.ge.s32.totalorder %s36, 1
      %s38 = scalar_select %p37, 0, %s36
      %s39 = sadd.s32 1, %s30
      %s40 = scalar_select %p37, %s39, %s30
      %p41 = scmp.ge.s32.totalorder %s40, 2
      %s42 = scalar_select %p41, 0, %s40
      %s43 = sadd.s32 %s30, %s31
      %p44 = scmp.lt.s32.totalorder %s43, 0
      %s45 = scalar_select %p44, %s43, 0
      %s46 = sadd.s32 %s42, %s38
      %p47 = scmp.lt.s32.totalorder %s46, 0
      %s48 = scalar_select %p47, %s46, 0
      %s49 = ssub.s32 %s45, %s48
      %p50 = scmp.eq.s32.totalorder %s49, 0
      %s52 = sadd.s32 %s51, 1
      %s53 = scalar_select %p50, %s51, %s52
      %p56 = pneg %p50
      %p57 = scmp.eq.s32.totalorder %s23, 1
      %p58 = por %p56, %p57
      %p59 = scmp.ne.s32.totalorder %s51, %s54
      %p60 = scmp.eq.s32.totalorder %s23, 0
      %p61 = por %p59, %p60
      %p62 = scmp.ne.s32.totalorder %s51, %s54
      %p63 = scmp.eq.s32.totalorder %s28, 1
      %p64 = por %p62, %p63
      %p65 = scmp.ne.s32.totalorder %s54, %s55
      %p66 = scmp.eq.s32.totalorder %s28, 0
      %p67 = por %p65, %p66
      %p68 = scmp.ne.s32.totalorder %s54, %s55
      %p69 = scmp.eq.s32.totalorder %s29, 1
      %p70 = por %p68, %p69
      %p72 = scmp.ne.s32.totalorder %s55, %s71
      %p73 = scmp.eq.s32.totalorder %s29, 0
      %p74 = por %p72, %p73
      %s75 = sadd.s32 %s30, %s31
      %p76 = scmp.lt.s32.totalorder %s75, 0
      %s77 = scalar_select %p76, %s75, 0
      %s78 = sadd.s32 %s42, %s38
      %p79 = scmp.lt.s32.totalorder %s78, 0
      %s80 = scalar_select %p79, %s78, 0
      %s81 = ssub.s32 %s77, %s80
      %p82 = scmp.eq.s32.totalorder %s81, 0
      %s84 = sadd.s32 %s83, 1
      %s85 = scalar_select %p82, %s83, %s84
      %p88 = pneg %p82
      %p89 = scmp.eq.s32.totalorder %s23, 1
      %p90 = por %p88, %p89
      %p91 = scmp.ne.s32.totalorder %s83, %s86
      %p92 = scmp.eq.s32.totalorder %s23, 0
      %p93 = por %p91, %p92
      %p94 = scmp.ne.s32.totalorder %s83, %s86
      %p95 = scmp.eq.s32.totalorder %s28, 1
      %p96 = por %p94, %p95
      %p97 = scmp.ne.s32.totalorder %s86, %s87
      %p98 = scmp.eq.s32.totalorder %s28, 0
      %p99 = por %p97, %p98
      %p100 = scmp.ne.s32.totalorder %s86, %s87
      %p101 = scmp.eq.s32.totalorder %s29, 1
      %p102 = por %p100, %p101
      %p104 = scmp.ne.s32.totalorder %s87, %s103
      %p105 = scmp.eq.s32.totalorder %s29, 0
      %p106 = por %p104, %p105
      %s107 = sadd.s32 %s30, %s31
      %p108 = scmp.lt.s32.totalorder %s107, 0
      %s109 = scalar_select %p108, %s107, 0
      %s110 = sadd.s32 %s42, %s38
      %p111 = scmp.lt.s32.totalorder %s110, 0
      %s112 = scalar_select %p111, %s110, 0
      %s113 = ssub.s32 %s109, %s112
      %p114 = scmp.eq.s32.totalorder %s113, 0
      %s116 = sadd.s32 %s115, 1
      %s117 = scalar_select %p114, %s115, %s116
      %p120 = pneg %p114
      %p121 = scmp.eq.s32.totalorder %s23, 1
      %p122 = por %p120, %p121
      %p123 = scmp.ne.s32.totalorder %s115, %s118
      %p124 = scmp.eq.s32.totalorder %s23, 0
      %p125 = por %p123, %p124
      %p126 = scmp.ne.s32.totalorder %s115, %s118
      %p127 = scmp.eq.s32.totalorder %s28, 1
      %p128 = por %p126, %p127
      %p129 = scmp.ne.s32.totalorder %s118, %s119
      %p130 = scmp.eq.s32.totalorder %s28, 0
      %p131 = por %p129, %p130
      %p132 = scmp.ne.s32.totalorder %s118, %s119
      %p133 = scmp.eq.s32.totalorder %s29, 1
      %p134 = por %p132, %p133
      %p136 = scmp.ne.s32.totalorder %s119, %s135
      %p137 = scmp.eq.s32.totalorder %s29, 0
      %p138 = por %p136, %p137
      %s139 = ssub.s32 %s30, %s42
      %p140 = scmp.eq.s32.totalorder %s139, 0
      %s142 = sadd.s32 %s141, 1
      %s143 = scalar_select %p140, %s141, %s142
      %p146 = pneg %p140
      %p147 = scmp.eq.s32.totalorder %s23, 1
      %p148 = por %p146, %p147
      %p149 = scmp.ne.s32.totalorder %s141, %s144
      %p150 = scmp.eq.s32.totalorder %s23, 0
      %p151 = por %p149, %p150
      %p152 = scmp.ne.s32.totalorder %s141, %s144
      %p153 = scmp.eq.s32.totalorder %s28, 1
      %p154 = por %p152, %p153
      %p155 = scmp.ne.s32.totalorder %s144, %s145
      %p156 = scmp.eq.s32.totalorder %s28, 0
      %p157 = por %p155, %p156
      %p158 = scmp.ne.s32.totalorder %s144, %s145
      %p159 = scmp.eq.s32.totalorder %s29, 1
      %p160 = por %p158, %p159
      %p162 = scmp.ne.s32.totalorder %s145, %s161
      %p163 = scmp.eq.s32.totalorder %s29, 0
      %p164 = por %p162, %p163
      %s165 = ssub.s32 %s30, %s42
      %p166 = scmp.eq.s32.totalorder %s165, 0
      %s168 = sadd.s32 %s167, 1
      %s169 = scalar_select %p166, %s167, %s168
      %p172 = pneg %p166
      %p173 = scmp.eq.s32.totalorder %s23, 1
      %p174 = por %p172, %p173
      %p175 = scmp.ne.s32.totalorder %s167, %s170
      %p176 = scmp.eq.s32.totalorder %s23, 0
      %p177 = por %p175, %p176
      %p178 = scmp.ne.s32.totalorder %s167, %s170
      %p179 = scmp.eq.s32.totalorder %s28, 1
      %p180 = por %p178, %p179
      %p181 = scmp.ne.s32.totalorder %s170, %s171
      %p182 = scmp.eq.s32.totalorder %s28, 0
      %p183 = por %p181, %p182
      %p184 = scmp.ne.s32.totalorder %s170, %s171
      %p185 = scmp.eq.s32.totalorder %s29, 1
      %p186 = por %p184, %p185
      %p188 = scmp.ne.s32.totalorder %s171, %s187
      %p189 = scmp.eq.s32.totalorder %s29, 0
      %p190 = por %p188, %p189
      %p191 = scmp.le.s32.totalorder 1, %s23
      %p192 = scmp.lt.s32.totalorder %s23, 3
      %p193 = pnand %p191, %p192
      %p194 = pneg %p193
      // Predicated region
      $region9: #{tpu_custom_call.1} parent=5 // pred_check
        _
      $region10: #{tpu_custom_call.1} parent=5 // pred_check_branch
        %196 = sbr.rel (%p193) target = $region12
      $region11: #{tpu_custom_call.1} parent=5 // pred_region
        %s197 = ssub.s32 %s23, 1
      $region12: #{tpu_custom_call.1} parent=5 // pred_fallthru
        _
      %p198 = scmp.lt.s32.totalorder %s23, 2
      // Predicated region
      $region13: #{tpu_custom_call.1} parent=5 // pred_check
        %p199 = pneg %p198
      $region14: #{tpu_custom_call.1} parent=5 // pred_check_branch
        %201 = sbr.rel (%p199) target = $region16
      $region15: #{tpu_custom_call.1} parent=5 // pred_region
        // Predicated region
        $region17: #{tpu_custom_call.1} parent=15 // pred_check
          %p202 = pneg %p61
        $region18: #{tpu_custom_call.1} parent=15 // pred_check_branch
          %204 = sbr.rel (%p202) target = $region20
        $region19: #{tpu_custom_call.1} parent=15 // pred_region
          %s205 = sand.u32 %s51, 1
          %s206 = scalar_lea.sflag [#allocation3], %s205
          %s207 = sand.u32 %s51, 1
          %s208 = smul.addr %s207, 512
          %s209 = scalar_lea.vmem [#allocation2], %s208
          %s210 = sadd.s32 %s30, %s31
          %p211 = scmp.lt.s32.totalorder %s210, 0
          %s212 = scalar_select %p211, %s210, 0
          %s213 = smul.u32 128, %s212
          %s214 = ssub.s32 1, %s213
          %s215 = smul.u32 64, %s214
          %s217 = ssub.s32 8192, %s215
          %218 = vsyncadd %s206, %s217
          %p219 = scmp.ne.s32.totalorder 0, %s215
          %s220 = smul.addr %s213, 64
          %s221 = scalar_lea.hbm %s0, %s220
          %s222 = smul.u32 4, %s214
          %s223 = sshll.u32 %s209, 4
          %s224 = int_to_ptr.vmem [resolvable:$true] %s223
          %s225 = sshll.u32 %s222, 4
          %229 = dma.hbm_to_vmem [thread:$0]  (%p219), %s221, %s225, %s224, %s206, 64, 64, 4
        $region20: #{tpu_custom_call.1} parent=15 // pred_fallthru
          _
        // Predicated region
        $region21: #{tpu_custom_call.1} parent=15 // pred_check
          %p230 = pneg %p93
        $region22: #{tpu_custom_call.1} parent=15 // pred_check_branch
          %232 = sbr.rel (%p230) target = $region24
        $region23: #{tpu_custom_call.1} parent=15 // pred_region
          %s233 = sand.u32 %s83, 1
          %s234 = scalar_lea.sflag [#allocation6], %s233
          %s235 = sand.u32 %s83, 1
          %s236 = smul.addr %s235, 512
          %s237 = scalar_lea.vmem [#allocation5], %s236
          %s238 = sadd.s32 %s30, %s31
          %p239 = scmp.lt.s32.totalorder %s238, 0
          %s240 = scalar_select %p239, %s238, 0
          %s241 = smul.u32 128, %s240
          %s242 = ssub.s32 1, %s241
          %s243 = smul.u32 64, %s242
          %s245 = ssub.s32 8192, %s243
          %246 = vsyncadd %s234, %s245
          %p247 = scmp.ne.s32.totalorder 0, %s243
          %s248 = smul.addr %s241, 64
          %s249 = scalar_lea.hbm %s1, %s248
          %s250 = smul.u32 4, %s242
          %s251 = sshll.u32 %s237, 4
          %s252 = int_to_ptr.vmem [resolvable:$true] %s251
          %s253 = sshll.u32 %s250, 4
          %257 = dma.hbm_to_vmem [thread:$0]  (%p247), %s249, %s253, %s252, %s234, 64, 64, 4
        $region24: #{tpu_custom_call.1} parent=15 // pred_fallthru
          _
        // Predicated region
        $region25: #{tpu_custom_call.1} parent=15 // pred_check
          %p258 = pneg %p125
        $region26: #{tpu_custom_call.1} parent=15 // pred_check_branch
          %260 = sbr.rel (%p258) target = $region28
        $region27: #{tpu_custom_call.1} parent=15 // pred_region
          %s261 = sadd.s32 %s30, %s31
          %p262 = scmp.lt.s32.totalorder %s261, 0
          %s263 = scalar_select %p262, %s261, 0
          %s264 = smul.u32 128, %s263
          %s265 = ssub.s32 1, %s264
          %s266 = smul.u32 64, %s265
          %p267 = scmp.lt.s32.totalorder %s264, 0
          %s268 = scalar_select %p267, %s264, 0
          %s269 = smul.addr %s268, 4
          %s270 = scalar_lea.vmem %s2, %s269
          %s271 = sadd.s32 %s30, %s31
          %p272 = scmp.lt.s32.totalorder %s271, 0
          %s273 = scalar_select %p272, %s271, 0
          %s274 = smul.u32 128, %s273
          %s275 = ssub.s32 1, %s274
          %s276 = smul.u32 64, %s275
        $region28: #{tpu_custom_call.1} parent=15 // pred_fallthru
          _
      $region16: #{tpu_custom_call.1} parent=5 // pred_fallthru
        _
      %p277 = scmp.le.s32.totalorder 1, %s23
      %p278 = scmp.lt.s32.totalorder %s23, 3
      %p279 = pnand %p277, %p278
      %p280 = pneg %p279
      // Predicated region
      $region29: #{tpu_custom_call.1} parent=5 // pred_check
        _
      $region30: #{tpu_custom_call.1} parent=5 // pred_check_branch
        %282 = sbr.rel (%p279) target = $region32
      $region31: #{tpu_custom_call.1} parent=5 // pred_region
        %s283 = ssub.s32 %s23, 1
        %s284 = sand.u32 %s54, 1
        %s285 = scalar_lea.sflag [#allocation3], %s284
        %s286 = sand.u32 %s54, 1
        %s287 = smul.addr %s286, 512
        %s288 = scalar_lea.vmem [#allocation2], %s287
        // Predicated region
        $region33: #{tpu_custom_call.1} parent=31 // pred_check
          %p289 = pneg %p67
        $region34: #{tpu_custom_call.1} parent=31 // pred_check_branch
          %291 = sbr.rel (%p289) target = $region36
        $region35: #{tpu_custom_call.1} parent=31 // pred_region
          %292 = dma.done %s285, 8192
        $region36: #{tpu_custom_call.1} parent=31 // pred_fallthru
          _
        %s293 = sand.u32 %s86, 1
        %s294 = scalar_lea.sflag [#allocation6], %s293
        %s295 = sand.u32 %s86, 1
        %s296 = smul.addr %s295, 512
        %s297 = scalar_lea.vmem [#allocation5], %s296
        // Predicated region
        $region37: #{tpu_custom_call.1} parent=31 // pred_check
          %p298 = pneg %p99
        $region38: #{tpu_custom_call.1} parent=31 // pred_check_branch
          %300 = sbr.rel (%p298) target = $region40
        $region39: #{tpu_custom_call.1} parent=31 // pred_region
          %301 = dma.done %s294, 8192
        $region40: #{tpu_custom_call.1} parent=31 // pred_fallthru
          _
        %s302 = sand.u32 %s54, 1
        %s303 = scalar_lea.sflag [#allocation3], %s302
        %s304 = sand.u32 %s54, 1
        %s305 = smul.addr %s304, 512
        %s306 = scalar_lea.vmem [#allocation2], %s305
        %p307 = pneg %p67
        %p308 = pneg %p64
        %s309 = sand.u32 %s86, 1
        %s310 = scalar_lea.sflag [#allocation6], %s309
        %s311 = sand.u32 %s86, 1
        %s312 = smul.addr %s311, 512
        %s313 = scalar_lea.vmem [#allocation5], %s312
        %p314 = pneg %p99
        %p315 = pneg %p96
        %s316 = sadd.s32 %s32, %s33
        %p317 = scmp.lt.s32.totalorder %s316, 0
        %s318 = scalar_select %p317, %s316, 0
        %s319 = smul.u32 128, %s318
        %s320 = ssub.s32 1, %s319
        %s321 = smul.u32 64, %s320
        %p322 = scmp.lt.s32.totalorder %s319, 0
        %s323 = scalar_select %p322, %s319, 0
        %s324 = smul.addr %s323, 4
        %s325 = scalar_lea.vmem %s2, %s324
        %p326 = pneg %p131
        %p327 = pneg %p128
        %p328 = pneg %p157
        %p329 = pneg %p154
        %s330 = sand.u32 %s144, 1
        %s331 = scalar_lea.sflag [#allocation4], %s330
        %s332 = sand.u32 %s144, 1
        %s333 = smul.addr %s332, 8
        %s334 = scalar_lea.vmem [#allocation7], %s333
        %p335 = pneg %p183
        %p336 = pneg %p180
        %s337 = sand.u32 %s170, 1
        %s338 = scalar_lea.sflag [#allocation9], %s337
        %s339 = sand.u32 %s170, 1
        %s340 = smul.addr %s339, 8
        %s341 = scalar_lea.vmem [#allocation8], %s340
        %s342 = sadd.s32 %s32, %s33
        %p343 = scmp.lt.s32.totalorder %s342, 0
        %s344 = scalar_select %p343, %s342, 0
        %s345 = smul.u32 128, %s344
        %s346 = ssub.s32 1, %s345
        %s347 = smul.u32 64, %s346
        %s348 = sadd.s32 %s32, %s33
        %p349 = scmp.lt.s32.totalorder %s348, 0
        %s350 = scalar_select %p349, %s348, 0
        %s351 = smul.u32 128, %s350
        %s352 = ssub.s32 1, %s351
        %s353 = smul.u32 64, %s352
        %s354 = sadd.s32 %s32, %s33
        %p355 = scmp.lt.s32.totalorder %s354, 0
        %s356 = scalar_select %p355, %s354, 0
        %s357 = smul.u32 128, %s356
        %s358 = ssub.s32 1, %s357
        %s359 = smul.u32 64, %s358
        %p360 = scmp.lt.s32.totalorder %s357, 0
        %s361 = scalar_select %p360, %s357, 0
        %s362 = smul.addr %s361, 4
        %s363 = scalar_lea.vmem %s2, %s362
        %s364 = sadd.s32 %s32, %s33
        %p365 = scmp.lt.s32.totalorder %s364, 0
        %s366 = scalar_select %p365, %s364, 0
        %s367 = smul.u32 128, %s366
        %s368 = ssub.s32 1, %s367
        %s369 = smul.u32 64, %s368
        %s370 = sadd.s32 %s32, %s33
        %p371 = scmp.eq.s32.totalorder %s33, 0
        // Predicated region
        $region41: #{tpu_custom_call.1} parent=31 // pred_check
          %p372 = pneg %p371
        $region42: #{tpu_custom_call.1} parent=31 // pred_check_branch
          %374 = sbr.rel (%p372) target = $region44
        $region43: #{tpu_custom_call.1} parent=31 // pred_region
          %375 = vst [vmem:[%s334] sm:$0xff] 0.0
          %376 = vst [vmem:[%s341] sm:$0xff] 0.0
        $region44: #{tpu_custom_call.1} parent=31 // pred_fallthru
          _
        %p377 = scmp.eq.s32.totalorder %s370, 0
        // Predicated region
        $region45: #{tpu_custom_call.1} parent=31 // pred_check
          %p378 = pneg %p377
        $region46: #{tpu_custom_call.1} parent=31 // pred_check_branch
          %380 = sbr.rel (%p378) target = $region48
        $region47: #{tpu_custom_call.1} parent=31 // pred_region
          %v381 = vlaneseq
          %v382 = vshrl.u32 %v381, 7
          %v383 = vadd.s32 %v382, 8
          %v384 = vadd.s32 %v382, 16
          %v385 = vadd.s32 %v382, 24
          %v386 = vadd.s32 %v382, 32
          %v387 = vadd.s32 %v382, 40
          %v388 = vadd.s32 %v382, 48
          %v389 = vadd.s32 %v382, 56
          %v390 = vadd.s32 %v382, 64
          %v391 = vadd.s32 %v382, 72
          %v392 = vadd.s32 %v382, 80
          %v393 = vadd.s32 %v382, 88
          %v394 = vadd.s32 %v382, 96
          %v395 = vadd.s32 %v382, 104
          %v396 = vadd.s32 %v382, 112
          %v397 = vadd.s32 %v382, 120
          %v398 = vadd.s32 %v382, 128
          %v399 = vadd.s32 %v382, 136
          %v400 = vadd.s32 %v382, 144
          %v401 = vadd.s32 %v382, 152
          %v402 = vadd.s32 %v382, 160
          %v403 = vadd.s32 %v382, 168
          %v404 = vadd.s32 %v382, 176
          %v405 = vadd.s32 %v382, 184
          %v406 = vadd.s32 %v382, 192
          %v407 = vadd.s32 %v382, 200
          %v408 = vadd.s32 %v382, 208
          %v409 = vadd.s32 %v382, 216
          %v410 = vadd.s32 %v382, 224
          %v411 = vadd.s32 %v382, 232
          %v412 = vadd.s32 %v382, 240
          %v413 = vadd.s32 %v382, 248
          %v414 = vadd.s32 %v382, 256
          %v415 = vadd.s32 %v382, 264
          %v416 = vadd.s32 %v382, 272
          %v417 = vadd.s32 %v382, 280
          %v418 = vadd.s32 %v382, 288
          %v419 = vadd.s32 %v382, 296
          %v420 = vadd.s32 %v382, 304
          %v421 = vadd.s32 %v382, 312
          %v422 = vadd.s32 %v382, 320
          %v423 = vadd.s32 %v382, 328
          %v424 = vadd.s32 %v382, 336
          %v425 = vadd.s32 %v382, 344
          %v426 = vadd.s32 %v382, 352
          %v427 = vadd.s32 %v382, 360
          %v428 = vadd.s32 %v382, 368
          %v429 = vadd.s32 %v382, 376
          %v430 = vadd.s32 %v382, 384
          %v431 = vadd.s32 %v382, 392
          %v432 = vadd.s32 %v382, 400
          %v433 = vadd.s32 %v382, 408
          %v434 = vadd.s32 %v382, 416
          %v435 = vadd.s32 %v382, 424
          %v436 = vadd.s32 %v382, 432
          %v437 = vadd.s32 %v382, 440
          %v438 = vadd.s32 %v382, 448
          %v439 = vadd.s32 %v382, 456
          %v440 = vadd.s32 %v382, 464
          %v441 = vadd.s32 %v382, 472
          %v442 = vadd.s32 %v382, 480
          %v443 = vadd.s32 %v382, 488
          %v444 = vadd.s32 %v382, 496
          %v445 = vadd.s32 %v382, 504
          %v446 = vld [vmem:[%s288] sm:$0xff]
          %v447 = vld [vmem:[%s288 + $0x8] sm:$0xff]
          %v448 = vld [vmem:[%s288 + $0x10] sm:$0xff]
          %v449 = vld [vmem:[%s288 + $0x18] sm:$0xff]
          %v450 = vld [vmem:[%s288 + $0x20] sm:$0xff]
          %v451 = vld [vmem:[%s288 + $0x28] sm:$0xff]
          %v452 = vld [vmem:[%s288 + $0x30] sm:$0xff]
          %v453 = vld [vmem:[%s288 + $0x38] sm:$0xff]
          %v454 = vld [vmem:[%s288 + $0x40] sm:$0xff]
          %v455 = vld [vmem:[%s288 + $0x48] sm:$0xff]
          %v456 = vld [vmem:[%s288 + $0x50] sm:$0xff]
          %v457 = vld [vmem:[%s288 + $0x58] sm:$0xff]
          %v458 = vld [vmem:[%s288 + $0x60] sm:$0xff]
          %v459 = vld [vmem:[%s288 + $0x68] sm:$0xff]
          %v460 = vld [vmem:[%s288 + $0x70] sm:$0xff]
          %v461 = vld [vmem:[%s288 + $0x78] sm:$0xff]
          %v462 = vld [vmem:[%s288 + $0x80] sm:$0xff]
          %v463 = vld [vmem:[%s288 + $0x88] sm:$0xff]
          %v464 = vld [vmem:[%s288 + $0x90] sm:$0xff]
          %v465 = vld [vmem:[%s288 + $0x98] sm:$0xff]
          %v466 = vld [vmem:[%s288 + $0xa0] sm:$0xff]
          %v467 = vld [vmem:[%s288 + $0xa8] sm:$0xff]
          %v468 = vld [vmem:[%s288 + $0xb0] sm:$0xff]
          %v469 = vld [vmem:[%s288 + $0xb8] sm:$0xff]
          %v470 = vld [vmem:[%s288 + $0xc0] sm:$0xff]
          %v471 = vld [vmem:[%s288 + $0xc8] sm:$0xff]
          %v472 = vld [vmem:[%s288 + $0xd0] sm:$0xff]
          %v473 = vld [vmem:[%s288 + $0xd8] sm:$0xff]
          %v474 = vld [vmem:[%s288 + $0xe0] sm:$0xff]
          %v475 = vld [vmem:[%s288 + $0xe8] sm:$0xff]
          %v476 = vld [vmem:[%s288 + $0xf0] sm:$0xff]
          %v477 = vld [vmem:[%s288 + $0xf8] sm:$0xff]
          %v478 = vld [vmem:[%s288 + $0x100] sm:$0xff]
          %v479 = vld [vmem:[%s288 + $0x108] sm:$0xff]
          %v480 = vld [vmem:[%s288 + $0x110] sm:$0xff]
          %v481 = vld [vmem:[%s288 + $0x118] sm:$0xff]
          %v482 = vld [vmem:[%s288 + $0x120] sm:$0xff]
          %v483 = vld [vmem:[%s288 + $0x128] sm:$0xff]
          %v484 = vld [vmem:[%s288 + $0x130] sm:$0xff]
          %v485 = vld [vmem:[%s288 + $0x138] sm:$0xff]
          %v486 = vld [vmem:[%s288 + $0x140] sm:$0xff]
          %v487 = vld [vmem:[%s288 + $0x148] sm:$0xff]
          %v488 = vld [vmem:[%s288 + $0x150] sm:$0xff]
          %v489 = vld [vmem:[%s288 + $0x158] sm:$0xff]
          %v490 = vld [vmem:[%s288 + $0x160] sm:$0xff]
          %v491 = vld [vmem:[%s288 + $0x168] sm:$0xff]
          %v492 = vld [vmem:[%s288 + $0x170] sm:$0xff]
          %v493 = vld [vmem:[%s288 + $0x178] sm:$0xff]
          %v494 = vld [vmem:[%s288 + $0x180] sm:$0xff]
          %v495 = vld [vmem:[%s288 + $0x188] sm:$0xff]
          %v496 = vld [vmem:[%s288 + $0x190] sm:$0xff]
          %v497 = vld [vmem:[%s288 + $0x198] sm:$0xff]
          %v498 = vld [vmem:[%s288 + $0x1a0] sm:$0xff]
          %v499 = vld [vmem:[%s288 + $0x1a8] sm:$0xff]
          %v500 = vld [vmem:[%s288 + $0x1b0] sm:$0xff]
          %v501 = vld [vmem:[%s288 + $0x1b8] sm:$0xff]
          %v502 = vld [vmem:[%s288 + $0x1c0] sm:$0xff]
          %v503 = vld [vmem:[%s288 + $0x1c8] sm:$0xff]
          %v504 = vld [vmem:[%s288 + $0x1d0] sm:$0xff]
          %v505 = vld [vmem:[%s288 + $0x1d8] sm:$0xff]
          %v506 = vld [vmem:[%s288 + $0x1e0] sm:$0xff]
          %v507 = vld [vmem:[%s288 + $0x1e8] sm:$0xff]
          %v508 = vld [vmem:[%s288 + $0x1f0] sm:$0xff]
          %v509 = vld [vmem:[%s288 + $0x1f8] sm:$0xff]
          %v510 = vld [vmem:[%s297] sm:$0xff]
          %v511 = vld [vmem:[%s297 + $0x8] sm:$0xff]
          %v512 = vld [vmem:[%s297 + $0x10] sm:$0xff]
          %v513 = vld [vmem:[%s297 + $0x18] sm:$0xff]
          %v514 = vld [vmem:[%s297 + $0x20] sm:$0xff]
          %v515 = vld [vmem:[%s297 + $0x28] sm:$0xff]
          %v516 = vld [vmem:[%s297 + $0x30] sm:$0xff]
          %v517 = vld [vmem:[%s297 + $0x38] sm:$0xff]
          %v518 = vld [vmem:[%s297 + $0x40] sm:$0xff]
          %v519 = vld [vmem:[%s297 + $0x48] sm:$0xff]
          %v520 = vld [vmem:[%s297 + $0x50] sm:$0xff]
          %v521 = vld [vmem:[%s297 + $0x58] sm:$0xff]
          %v522 = vld [vmem:[%s297 + $0x60] sm:$0xff]
          %v523 = vld [vmem:[%s297 + $0x68] sm:$0xff]
          %v524 = vld [vmem:[%s297 + $0x70] sm:$0xff]
          %v525 = vld [vmem:[%s297 + $0x78] sm:$0xff]
          %v526 = vld [vmem:[%s297 + $0x80] sm:$0xff]
          %v527 = vld [vmem:[%s297 + $0x88] sm:$0xff]
          %v528 = vld [vmem:[%s297 + $0x90] sm:$0xff]
          %v529 = vld [vmem:[%s297 + $0x98] sm:$0xff]
          %v530 = vld [vmem:[%s297 + $0xa0] sm:$0xff]
          %v531 = vld [vmem:[%s297 + $0xa8] sm:$0xff]
          %v532 = vld [vmem:[%s297 + $0xb0] sm:$0xff]
          %v533 = vld [vmem:[%s297 + $0xb8] sm:$0xff]
          %v534 = vld [vmem:[%s297 + $0xc0] sm:$0xff]
          %v535 = vld [vmem:[%s297 + $0xc8] sm:$0xff]
          %v536 = vld [vmem:[%s297 + $0xd0] sm:$0xff]
          %v537 = vld [vmem:[%s297 + $0xd8] sm:$0xff]
          %v538 = vld [vmem:[%s297 + $0xe0] sm:$0xff]
          %v539 = vld [vmem:[%s297 + $0xe8] sm:$0xff]
          %v540 = vld [vmem:[%s297 + $0xf0] sm:$0xff]
          %v541 = vld [vmem:[%s297 + $0xf8] sm:$0xff]
          %v542 = vld [vmem:[%s297 + $0x100] sm:$0xff]
          %v543 = vld [vmem:[%s297 + $0x108] sm:$0xff]
          %v544 = vld [vmem:[%s297 + $0x110] sm:$0xff]
          %v545 = vld [vmem:[%s297 + $0x118] sm:$0xff]
          %v546 = vld [vmem:[%s297 + $0x120] sm:$0xff]
          %v547 = vld [vmem:[%s297 + $0x128] sm:$0xff]
          %v548 = vld [vmem:[%s297 + $0x130] sm:$0xff]
          %v549 = vld [vmem:[%s297 + $0x138] sm:$0xff]
          %v550 = vld [vmem:[%s297 + $0x140] sm:$0xff]
          %v551 = vld [vmem:[%s297 + $0x148] sm:$0xff]
          %v552 = vld [vmem:[%s297 + $0x150] sm:$0xff]
          %v553 = vld [vmem:[%s297 + $0x158] sm:$0xff]
          %v554 = vld [vmem:[%s297 + $0x160] sm:$0xff]
          %v555 = vld [vmem:[%s297 + $0x168] sm:$0xff]
          %v556 = vld [vmem:[%s297 + $0x170] sm:$0xff]
          %v557 = vld [vmem:[%s297 + $0x178] sm:$0xff]
          %v558 = vld [vmem:[%s297 + $0x180] sm:$0xff]
          %v559 = vld [vmem:[%s297 + $0x188] sm:$0xff]
          %v560 = vld [vmem:[%s297 + $0x190] sm:$0xff]
          %v561 = vld [vmem:[%s297 + $0x198] sm:$0xff]
          %v562 = vld [vmem:[%s297 + $0x1a0] sm:$0xff]
          %v563 = vld [vmem:[%s297 + $0x1a8] sm:$0xff]
          %v564 = vld [vmem:[%s297 + $0x1b0] sm:$0xff]
          %v565 = vld [vmem:[%s297 + $0x1b8] sm:$0xff]
          %v566 = vld [vmem:[%s297 + $0x1c0] sm:$0xff]
          %v567 = vld [vmem:[%s297 + $0x1c8] sm:$0xff]
          %v568 = vld [vmem:[%s297 + $0x1d0] sm:$0xff]
          %v569 = vld [vmem:[%s297 + $0x1d8] sm:$0xff]
          %v570 = vld [vmem:[%s297 + $0x1e0] sm:$0xff]
          %v571 = vld [vmem:[%s297 + $0x1e8] sm:$0xff]
          %v572 = vld [vmem:[%s297 + $0x1f0] sm:$0xff]
          %v573 = vld [vmem:[%s297 + $0x1f8] sm:$0xff]
          %v574 = vld [vmem:[%s363] sm:$0xff]
          %v575 = vld [vmem:[%s363 + $0x8] sm:$0xff]
          %v576 = vld [vmem:[%s363 + $0x10] sm:$0xff]
          %v577 = vld [vmem:[%s363 + $0x18] sm:$0xff]
          %v578 = vld [vmem:[%s363 + $0x20] sm:$0xff]
          %v579 = vld [vmem:[%s363 + $0x28] sm:$0xff]
          %v580 = vld [vmem:[%s363 + $0x30] sm:$0xff]
          %v581 = vld [vmem:[%s363 + $0x38] sm:$0xff]
          %v582 = vld [vmem:[%s363 + $0x40] sm:$0xff]
          %v583 = vld [vmem:[%s363 + $0x48] sm:$0xff]
          %v584 = vld [vmem:[%s363 + $0x50] sm:$0xff]
          %v585 = vld [vmem:[%s363 + $0x58] sm:$0xff]
          %v586 = vld [vmem:[%s363 + $0x60] sm:$0xff]
          %v587 = vld [vmem:[%s363 + $0x68] sm:$0xff]
          %v588 = vld [vmem:[%s363 + $0x70] sm:$0xff]
          %v589 = vld [vmem:[%s363 + $0x78] sm:$0xff]
          %v590 = vld [vmem:[%s363 + $0x80] sm:$0xff]
          %v591 = vld [vmem:[%s363 + $0x88] sm:$0xff]
          %v592 = vld [vmem:[%s363 + $0x90] sm:$0xff]
          %v593 = vld [vmem:[%s363 + $0x98] sm:$0xff]
          %v594 = vld [vmem:[%s363 + $0xa0] sm:$0xff]
          %v595 = vld [vmem:[%s363 + $0xa8] sm:$0xff]
          %v596 = vld [vmem:[%s363 + $0xb0] sm:$0xff]
          %v597 = vld [vmem:[%s363 + $0xb8] sm:$0xff]
          %v598 = vld [vmem:[%s363 + $0xc0] sm:$0xff]
          %v599 = vld [vmem:[%s363 + $0xc8] sm:$0xff]
          %v600 = vld [vmem:[%s363 + $0xd0] sm:$0xff]
          %v601 = vld [vmem:[%s363 + $0xd8] sm:$0xff]
          %v602 = vld [vmem:[%s363 + $0xe0] sm:$0xff]
          %v603 = vld [vmem:[%s363 + $0xe8] sm:$0xff]
          %v604 = vld [vmem:[%s363 + $0xf0] sm:$0xff]
          %v605 = vld [vmem:[%s363 + $0xf8] sm:$0xff]
          %v606 = vld [vmem:[%s363 + $0x100] sm:$0xff]
          %v607 = vld [vmem:[%s363 + $0x108] sm:$0xff]
          %v608 = vld [vmem:[%s363 + $0x110] sm:$0xff]
          %v609 = vld [vmem:[%s363 + $0x118] sm:$0xff]
          %v610 = vld [vmem:[%s363 + $0x120] sm:$0xff]
          %v611 = vld [vmem:[%s363 + $0x128] sm:$0xff]
          %v612 = vld [vmem:[%s363 + $0x130] sm:$0xff]
          %v613 = vld [vmem:[%s363 + $0x138] sm:$0xff]
          %v614 = vld [vmem:[%s363 + $0x140] sm:$0xff]
          %v615 = vld [vmem:[%s363 + $0x148] sm:$0xff]
          %v616 = vld [vmem:[%s363 + $0x150] sm:$0xff]
          %v617 = vld [vmem:[%s363 + $0x158] sm:$0xff]
          %v618 = vld [vmem:[%s363 + $0x160] sm:$0xff]
          %v619 = vld [vmem:[%s363 + $0x168] sm:$0xff]
          %v620 = vld [vmem:[%s363 + $0x170] sm:$0xff]
          %v621 = vld [vmem:[%s363 + $0x178] sm:$0xff]
          %v622 = vld [vmem:[%s363 + $0x180] sm:$0xff]
          %v623 = vld [vmem:[%s363 + $0x188] sm:$0xff]
          %v624 = vld [vmem:[%s363 + $0x190] sm:$0xff]
          %v625 = vld [vmem:[%s363 + $0x198] sm:$0xff]
          %v626 = vld [vmem:[%s363 + $0x1a0] sm:$0xff]
          %v627 = vld [vmem:[%s363 + $0x1a8] sm:$0xff]
          %v628 = vld [vmem:[%s363 + $0x1b0] sm:$0xff]
          %v629 = vld [vmem:[%s363 + $0x1b8] sm:$0xff]
          %v630 = vld [vmem:[%s363 + $0x1c0] sm:$0xff]
          %v631 = vld [vmem:[%s363 + $0x1c8] sm:$0xff]
          %v632 = vld [vmem:[%s363 + $0x1d0] sm:$0xff]
          %v633 = vld [vmem:[%s363 + $0x1d8] sm:$0xff]
          %v634 = vld [vmem:[%s363 + $0x1e0] sm:$0xff]
          %v635 = vld [vmem:[%s363 + $0x1e8] sm:$0xff]
          %v636 = vld [vmem:[%s363 + $0x1f0] sm:$0xff]
          %v637 = vld [vmem:[%s363 + $0x1f8] sm:$0xff]
          %s638 = smul.u32 %s370, 512
          %v639 = vstv %s638
          %v640 = vadd.s32 %v639, %v382
          %v641 = vadd.s32 %v639, %v383
          %v642 = vadd.s32 %v639, %v384
          %v643 = vadd.s32 %v639, %v385
          %v644 = vadd.s32 %v639, %v386
          %v645 = vadd.s32 %v639, %v387
          %v646 = vadd.s32 %v639, %v388
          %v647 = vadd.s32 %v639, %v389
          %v648 = vadd.s32 %v639, %v390
          %v649 = vadd.s32 %v639, %v391
          %v650 = vadd.s32 %v639, %v392
          %v651 = vadd.s32 %v639, %v393
          %v652 = vadd.s32 %v639, %v394
          %v653 = vadd.s32 %v639, %v395
          %v654 = vadd.s32 %v639, %v396
          %v655 = vadd.s32 %v639, %v397
          %v656 = vadd.s32 %v639, %v398
          %v657 = vadd.s32 %v639, %v399
          %v658 = vadd.s32 %v639, %v400
          %v659 = vadd.s32 %v639, %v401
          %v660 = vadd.s32 %v639, %v402
          %v661 = vadd.s32 %v639, %v403
          %v662 = vadd.s32 %v639, %v404
          %v663 = vadd.s32 %v639, %v405
          %v664 = vadd.s32 %v639, %v406
          %v665 = vadd.s32 %v639, %v407
          %v666 = vadd.s32 %v639, %v408
          %v667 = vadd.s32 %v639, %v409
          %v668 = vadd.s32 %v639, %v410
          %v669 = vadd.s32 %v639, %v411
          %v670 = vadd.s32 %v639, %v412
          %v671 = vadd.s32 %v639, %v413
          %v672 = vadd.s32 %v639, %v414
          %v673 = vadd.s32 %v639, %v415
          %v674 = vadd.s32 %v639, %v416
          %v675 = vadd.s32 %v639, %v417
          %v676 = vadd.s32 %v639, %v418
          %v677 = vadd.s32 %v639, %v419
          %v678 = vadd.s32 %v639, %v420
          %v679 = vadd.s32 %v639, %v421
          %v680 = vadd.s32 %v639, %v422
          %v681 = vadd.s32 %v639, %v423
          %v682 = vadd.s32 %v639, %v424
          %v683 = vadd.s32 %v639, %v425
          %v684 = vadd.s32 %v639, %v426
          %v685 = vadd.s32 %v639, %v427
          %v686 = vadd.s32 %v639, %v428
          %v687 = vadd.s32 %v639, %v429
          %v688 = vadd.s32 %v639, %v430
          %v689 = vadd.s32 %v639, %v431
          %v690 = vadd.s32 %v639, %v432
          %v691 = vadd.s32 %v639, %v433
          %v692 = vadd.s32 %v639, %v434
          %v693 = vadd.s32 %v639, %v435
          %v694 = vadd.s32 %v639, %v436
          %v695 = vadd.s32 %v639, %v437
          %v696 = vadd.s32 %v639, %v438
          %v697 = vadd.s32 %v639, %v439
          %v698 = vadd.s32 %v639, %v440
          %v699 = vadd.s32 %v639, %v441
          %v700 = vadd.s32 %v639, %v442
          %v701 = vadd.s32 %v639, %v443
          %v702 = vadd.s32 %v639, %v444
          %v703 = vadd.s32 %v639, %v445
          %vm704 = vcmp.lt.s32.totalorder %v640, 4
          %vm705 = vcmp.lt.s32.totalorder %v641, 4
          %vm706 = vcmp.lt.s32.totalorder %v642, 4
          %vm707 = vcmp.lt.s32.totalorder %v643, 4
          %vm708 = vcmp.lt.s32.totalorder %v644, 4
          %vm709 = vcmp.lt.s32.totalorder %v645, 4
          %vm710 = vcmp.lt.s32.totalorder %v646, 4
          %vm711 = vcmp.lt.s32.totalorder %v647, 4
          %vm712 = vcmp.lt.s32.totalorder %v648, 4
          %vm713 = vcmp.lt.s32.totalorder %v649, 4
          %vm714 = vcmp.lt.s32.totalorder %v650, 4
          %vm715 = vcmp.lt.s32.totalorder %v651, 4
          %vm716 = vcmp.lt.s32.totalorder %v652, 4
          %vm717 = vcmp.lt.s32.totalorder %v653, 4
          %vm718 = vcmp.lt.s32.totalorder %v654, 4
          %vm719 = vcmp.lt.s32.totalorder %v655, 4
          %vm720 = vcmp.lt.s32.totalorder %v656, 4
          %vm721 = vcmp.lt.s32.totalorder %v657, 4
          %vm722 = vcmp.lt.s32.totalorder %v658, 4
          %vm723 = vcmp.lt.s32.totalorder %v659, 4
          %vm724 = vcmp.lt.s32.totalorder %v660, 4
          %vm725 = vcmp.lt.s32.totalorder %v661, 4
          %vm726 = vcmp.lt.s32.totalorder %v662, 4
          %vm727 = vcmp.lt.s32.totalorder %v663, 4
          %vm728 = vcmp.lt.s32.totalorder %v664, 4
          %vm729 = vcmp.lt.s32.totalorder %v665, 4
          %vm730 = vcmp.lt.s32.totalorder %v666, 4
          %vm731 = vcmp.lt.s32.totalorder %v667, 4
          %vm732 = vcmp.lt.s32.totalorder %v668, 4
          %vm733 = vcmp.lt.s32.totalorder %v669, 4
          %vm734 = vcmp.lt.s32.totalorder %v670, 4
          %vm735 = vcmp.lt.s32.totalorder %v671, 4
          %vm736 = vcmp.lt.s32.totalorder %v672, 4
          %vm737 = vcmp.lt.s32.totalorder %v673, 4
          %vm738 = vcmp.lt.s32.totalorder %v674, 4
          %vm739 = vcmp.lt.s32.totalorder %v675, 4
          %vm740 = vcmp.lt.s32.totalorder %v676, 4
          %vm741 = vcmp.lt.s32.totalorder %v677, 4
          %vm742 = vcmp.lt.s32.totalorder %v678, 4
          %vm743 = vcmp.lt.s32.totalorder %v679, 4
          %vm744 = vcmp.lt.s32.totalorder %v680, 4
          %vm745 = vcmp.lt.s32.totalorder %v681, 4
          %vm746 = vcmp.lt.s32.totalorder %v682, 4
          %vm747 = vcmp.lt.s32.totalorder %v683, 4
          %vm748 = vcmp.lt.s32.totalorder %v684, 4
          %vm749 = vcmp.lt.s32.totalorder %v685, 4
          %vm750 = vcmp.lt.s32.totalorder %v686, 4
          %vm751 = vcmp.lt.s32.totalorder %v687, 4
          %vm752 = vcmp.lt.s32.totalorder %v688, 4
          %vm753 = vcmp.lt.s32.totalorder %v689, 4
          %vm754 = vcmp.lt.s32.totalorder %v690, 4
          %vm755 = vcmp.lt.s32.totalorder %v691, 4
          %vm756 = vcmp.lt.s32.totalorder %v692, 4
          %vm757 = vcmp.lt.s32.totalorder %v693, 4
          %vm758 = vcmp.lt.s32.totalorder %v694, 4
          %vm759 = vcmp.lt.s32.totalorder %v695, 4
          %vm760 = vcmp.lt.s32.totalorder %v696, 4
          %vm761 = vcmp.lt.s32.totalorder %v697, 4
          %vm762 = vcmp.lt.s32.totalorder %v698, 4
          %vm763 = vcmp.lt.s32.totalorder %v699, 4
          %vm764 = vcmp.lt.s32.totalorder %v700, 4
          %vm765 = vcmp.lt.s32.totalorder %v701, 4
          %vm766 = vcmp.lt.s32.totalorder %v702, 4
          %vm767 = vcmp.lt.s32.totalorder %v703, 4
          %v768 = vsel %vm704, %v446, 0.0
          %v769 = vsel %vm705, %v447, 0.0
          %v770 = vsel %vm706, %v448, 0.0
          %v771 = vsel %vm707, %v449, 0.0
          %v772 = vsel %vm708, %v450, 0.0
          %v773 = vsel %vm709, %v451, 0.0
          %v774 = vsel %vm710, %v452, 0.0
          %v775 = vsel %vm711, %v453, 0.0
          %v776 = vsel %vm712, %v454, 0.0
          %v777 = vsel %vm713, %v455, 0.0
          %v778 = vsel %vm714, %v456, 0.0
          %v779 = vsel %vm715, %v457, 0.0
          %v780 = vsel %vm716, %v458, 0.0
          %v781 = vsel %vm717, %v459, 0.0
          %v782 = vsel %vm718, %v460, 0.0
          %v783 = vsel %vm719, %v461, 0.0
          %v784 = vsel %vm720, %v462, 0.0
          %v785 = vsel %vm721, %v463, 0.0
          %v786 = vsel %vm722, %v464, 0.0
          %v787 = vsel %vm723, %v465, 0.0
          %v788 = vsel %vm724, %v466, 0.0
          %v789 = vsel %vm725, %v467, 0.0
          %v790 = vsel %vm726, %v468, 0.0
          %v791 = vsel %vm727, %v469, 0.0
          %v792 = vsel %vm728, %v470, 0.0
          %v793 = vsel %vm729, %v471, 0.0
          %v794 = vsel %vm730, %v472, 0.0
          %v795 = vsel %vm731, %v473, 0.0
          %v796 = vsel %vm732, %v474, 0.0
          %v797 = vsel %vm733, %v475, 0.0
          %v798 = vsel %vm734, %v476, 0.0
          %v799 = vsel %vm735, %v477, 0.0
          %v800 = vsel %vm736, %v478, 0.0
          %v801 = vsel %vm737, %v479, 0.0
          %v802 = vsel %vm738, %v480, 0.0
          %v803 = vsel %vm739, %v481, 0.0
          %v804 = vsel %vm740, %v482, 0.0
          %v805 = vsel %vm741, %v483, 0.0
          %v806 = vsel %vm742, %v484, 0.0
          %v807 = vsel %vm743, %v485, 0.0
          %v808 = vsel %vm744, %v486, 0.0
          %v809 = vsel %vm745, %v487, 0.0
          %v810 = vsel %vm746, %v488, 0.0
          %v811 = vsel %vm747, %v489, 0.0
          %v812 = vsel %vm748, %v490, 0.0
          %v813 = vsel %vm749, %v491, 0.0
          %v814 = vsel %vm750, %v492, 0.0
          %v815 = vsel %vm751, %v493, 0.0
          %v816 = vsel %vm752, %v494, 0.0
          %v817 = vsel %vm753, %v495, 0.0
          %v818 = vsel %vm754, %v496, 0.0
          %v819 = vsel %vm755, %v497, 0.0
          %v820 = vsel %vm756, %v498, 0.0
          %v821 = vsel %vm757, %v499, 0.0
          %v822 = vsel %vm758, %v500, 0.0
          %v823 = vsel %vm759, %v501, 0.0
          %v824 = vsel %vm760, %v502, 0.0
          %v825 = vsel %vm761, %v503, 0.0
          %v826 = vsel %vm762, %v504, 0.0
          %v827 = vsel %vm763, %v505, 0.0
          %v828 = vsel %vm764, %v506, 0.0
          %v829 = vsel %vm765, %v507, 0.0
          %v830 = vsel %vm766, %v508, 0.0
          %v831 = vsel %vm767, %v509, 0.0
          %v832 = vsel %vm704, %v574, 0.0
          %v833 = vsel %vm705, %v575, 0.0
          %v834 = vsel %vm706, %v576, 0.0
          %v835 = vsel %vm707, %v577, 0.0
          %v836 = vsel %vm708, %v578, 0.0
          %v837 = vsel %vm709, %v579, 0.0
          %v838 = vsel %vm710, %v580, 0.0
          %v839 = vsel %vm711, %v581, 0.0
          %v840 = vsel %vm712, %v582, 0.0
          %v841 = vsel %vm713, %v583, 0.0
          %v842 = vsel %vm714, %v584, 0.0
          %v843 = vsel %vm715, %v585, 0.0
          %v844 = vsel %vm716, %v586, 0.0
          %v845 = vsel %vm717, %v587, 0.0
          %v846 = vsel %vm718, %v588, 0.0
          %v847 = vsel %vm719, %v589, 0.0
          %v848 = vsel %vm720, %v590, 0.0
          %v849 = vsel %vm721, %v591, 0.0
          %v850 = vsel %vm722, %v592, 0.0
          %v851 = vsel %vm723, %v593, 0.0
          %v852 = vsel %vm724, %v594, 0.0
          %v853 = vsel %vm725, %v595, 0.0
          %v854 = vsel %vm726, %v596, 0.0
          %v855 = vsel %vm727, %v597, 0.0
          %v856 = vsel %vm728, %v598, 0.0
          %v857 = vsel %vm729, %v599, 0.0
          %v858 = vsel %vm730, %v600, 0.0
          %v859 = vsel %vm731, %v601, 0.0
          %v860 = vsel %vm732, %v602, 0.0
          %v861 = vsel %vm733, %v603, 0.0
          %v862 = vsel %vm734, %v604, 0.0
          %v863 = vsel %vm735, %v605, 0.0
          %v864 = vsel %vm736, %v606, 0.0
          %v865 = vsel %vm737, %v607, 0.0
          %v866 = vsel %vm738, %v608, 0.0
          %v867 = vsel %vm739, %v609, 0.0
          %v868 = vsel %vm740, %v610, 0.0
          %v869 = vsel %vm741, %v611, 0.0
          %v870 = vsel %vm742, %v612, 0.0
          %v871 = vsel %vm743, %v613, 0.0
          %v872 = vsel %vm744, %v614, 0.0
          %v873 = vsel %vm745, %v615, 0.0
          %v874 = vsel %vm746, %v616, 0.0
          %v875 = vsel %vm747, %v617, 0.0
          %v876 = vsel %vm748, %v618, 0.0
          %v877 = vsel %vm749, %v619, 0.0
          %v878 = vsel %vm750, %v620, 0.0
          %v879 = vsel %vm751, %v621, 0.0
          %v880 = vsel %vm752, %v622, 0.0
          %v881 = vsel %vm753, %v623, 0.0
          %v882 = vsel %vm754, %v624, 0.0
          %v883 = vsel %vm755, %v625, 0.0
          %v884 = vsel %vm756, %v626, 0.0
          %v885 = vsel %vm757, %v627, 0.0
          %v886 = vsel %vm758, %v628, 0.0
          %v887 = vsel %vm759, %v629, 0.0
          %v888 = vsel %vm760, %v630, 0.0
          %v889 = vsel %vm761, %v631, 0.0
          %v890 = vsel %vm762, %v632, 0.0
          %v891 = vsel %vm763, %v633, 0.0
          %v892 = vsel %vm764, %v634, 0.0
          %v893 = vsel %vm765, %v635, 0.0
          %v894 = vsel %vm766, %v636, 0.0
          %v895 = vsel %vm767, %v637, 0.0
          %v896 = vsel %vm704, %v510, 1.0
          %v897 = vsel %vm705, %v511, 1.0
          %v898 = vsel %vm706, %v512, 1.0
          %v899 = vsel %vm707, %v513, 1.0
          %v900 = vsel %vm708, %v514, 1.0
          %v901 = vsel %vm709, %v515, 1.0
          %v902 = vsel %vm710, %v516, 1.0
          %v903 = vsel %vm711, %v517, 1.0
          %v904 = vsel %vm712, %v518, 1.0
          %v905 = vsel %vm713, %v519, 1.0
          %v906 = vsel %vm714, %v520, 1.0
          %v907 = vsel %vm715, %v521, 1.0
          %v908 = vsel %vm716, %v522, 1.0
          %v909 = vsel %vm717, %v523, 1.0
          %v910 = vsel %vm718, %v524, 1.0
          %v911 = vsel %vm719, %v525, 1.0
          %v912 = vsel %vm720, %v526, 1.0
          %v913 = vsel %vm721, %v527, 1.0
          %v914 = vsel %vm722, %v528, 1.0
          %v915 = vsel %vm723, %v529, 1.0
          %v916 = vsel %vm724, %v530, 1.0
          %v917 = vsel %vm725, %v531, 1.0
          %v918 = vsel %vm726, %v532, 1.0
          %v919 = vsel %vm727, %v533, 1.0
          %v920 = vsel %vm728, %v534, 1.0
          %v921 = vsel %vm729, %v535, 1.0
          %v922 = vsel %vm730, %v536, 1.0
          %v923 = vsel %vm731, %v537, 1.0
          %v924 = vsel %vm732, %v538, 1.0
          %v925 = vsel %vm733, %v539, 1.0
          %v926 = vsel %vm734, %v540, 1.0
          %v927 = vsel %vm735, %v541, 1.0
          %v928 = vsel %vm736, %v542, 1.0
          %v929 = vsel %vm737, %v543, 1.0
          %v930 = vsel %vm738, %v544, 1.0
          %v931 = vsel %vm739, %v545, 1.0
          %v932 = vsel %vm740, %v546, 1.0
          %v933 = vsel %vm741, %v547, 1.0
          %v934 = vsel %vm742, %v548, 1.0
          %v935 = vsel %vm743, %v549, 1.0
          %v936 = vsel %vm744, %v550, 1.0
          %v937 = vsel %vm745, %v551, 1.0
          %v938 = vsel %vm746, %v552, 1.0
          %v939 = vsel %vm747, %v553, 1.0
          %v940 = vsel %vm748, %v554, 1.0
          %v941 = vsel %vm749, %v555, 1.0
          %v942 = vsel %vm750, %v556, 1.0
          %v943 = vsel %vm751, %v557, 1.0
          %v944 = vsel %vm752, %v558, 1.0
          %v945 = vsel %vm753, %v559, 1.0
          %v946 = vsel %vm754, %v560, 1.0
          %v947 = vsel %vm755, %v561, 1.0
          %v948 = vsel %vm756, %v562, 1.0
          %v949 = vsel %vm757, %v563, 1.0
          %v950 = vsel %vm758, %v564, 1.0
          %v951 = vsel %vm759, %v565, 1.0
          %v952 = vsel %vm760, %v566, 1.0
          %v953 = vsel %vm761, %v567, 1.0
          %v954 = vsel %vm762, %v568, 1.0
          %v955 = vsel %vm763, %v569, 1.0
          %v956 = vsel %vm764, %v570, 1.0
          %v957 = vsel %vm765, %v571, 1.0
          %v958 = vsel %vm766, %v572, 1.0
          %v959 = vsel %vm767, %v573, 1.0
          %v960 = vsub.f32 %v832, %v768
          %v961 = vsub.f32 %v833, %v769
          %v962 = vsub.f32 %v834, %v770
          %v963 = vsub.f32 %v835, %v771
          %v964 = vsub.f32 %v836, %v772
          %v965 = vsub.f32 %v837, %v773
          %v966 = vsub.f32 %v838, %v774
          %v967 = vsub.f32 %v839, %v775
          %v968 = vsub.f32 %v840, %v776
          %v969 = vsub.f32 %v841, %v777
          %v970 = vsub.f32 %v842, %v778
          %v971 = vsub.f32 %v843, %v779
          %v972 = vsub.f32 %v844, %v780
          %v973 = vsub.f32 %v845, %v781
          %v974 = vsub.f32 %v846, %v782
          %v975 = vsub.f32 %v847, %v783
          %v976 = vsub.f32 %v848, %v784
          %v977 = vsub.f32 %v849, %v785
          %v978 = vsub.f32 %v850, %v786
          %v979 = vsub.f32 %v851, %v787
          %v980 = vsub.f32 %v852, %v788
          %v981 = vsub.f32 %v853, %v789
          %v982 = vsub.f32 %v854, %v790
          %v983 = vsub.f32 %v855, %v791
          %v984 = vsub.f32 %v856, %v792
          %v985 = vsub.f32 %v857, %v793
          %v986 = vsub.f32 %v858, %v794
          %v987 = vsub.f32 %v859, %v795
          %v988 = vsub.f32 %v860, %v796
          %v989 = vsub.f32 %v861, %v797
          %v990 = vsub.f32 %v862, %v798
          %v991 = vsub.f32 %v863, %v799
          %v992 = vsub.f32 %v864, %v800
          %v993 = vsub.f32 %v865, %v801
          %v994 = vsub.f32 %v866, %v802
          %v995 = vsub.f32 %v867, %v803
          %v996 = vsub.f32 %v868, %v804
          %v997 = vsub.f32 %v869, %v805
          %v998 = vsub.f32 %v870, %v806
          %v999 = vsub.f32 %v871, %v807
          %v1000 = vsub.f32 %v872, %v808
          %v1001 = vsub.f32 %v873, %v809
          %v1002 = vsub.f32 %v874, %v810
          %v1003 = vsub.f32 %v875, %v811
          %v1004 = vsub.f32 %v876, %v812
          %v1005 = vsub.f32 %v877, %v813
          %v1006 = vsub.f32 %v878, %v814
          %v1007 = vsub.f32 %v879, %v815
          %v1008 = vsub.f32 %v880, %v816
          %v1009 = vsub.f32 %v881, %v817
          %v1010 = vsub.f32 %v882, %v818
          %v1011 = vsub.f32 %v883, %v819
          %v1012 = vsub.f32 %v884, %v820
          %v1013 = vsub.f32 %v885, %v821
          %v1014 = vsub.f32 %v886, %v822
          %v1015 = vsub.f32 %v887, %v823
          %v1016 = vsub.f32 %v888, %v824
          %v1017 = vsub.f32 %v889, %v825
          %v1018 = vsub.f32 %v890, %v826
          %v1019 = vsub.f32 %v891, %v827
          %v1020 = vsub.f32 %v892, %v828
          %v1021 = vsub.f32 %v893, %v829
          %v1022 = vsub.f32 %v894, %v830
          %v1023 = vsub.f32 %v895, %v831
          %v1024 = vmul.f32 %v960, %v960
          %v1025 = vmul.f32 %v961, %v961
          %v1026 = vmul.f32 %v962, %v962
          %v1027 = vmul.f32 %v963, %v963
          %v1028 = vmul.f32 %v964, %v964
          %v1029 = vmul.f32 %v965, %v965
          %v1030 = vmul.f32 %v966, %v966
          %v1031 = vmul.f32 %v967, %v967
          %v1032 = vmul.f32 %v968, %v968
          %v1033 = vmul.f32 %v969, %v969
          %v1034 = vmul.f32 %v970, %v970
          %v1035 = vmul.f32 %v971, %v971
          %v1036 = vmul.f32 %v972, %v972
          %v1037 = vmul.f32 %v973, %v973
          %v1038 = vmul.f32 %v974, %v974
          %v1039 = vmul.f32 %v975, %v975
          %v1040 = vmul.f32 %v976, %v976
          %v1041 = vmul.f32 %v977, %v977
          %v1042 = vmul.f32 %v978, %v978
          %v1043 = vmul.f32 %v979, %v979
          %v1044 = vmul.f32 %v980, %v980
          %v1045 = vmul.f32 %v981, %v981
          %v1046 = vmul.f32 %v982, %v982
          %v1047 = vmul.f32 %v983, %v983
          %v1048 = vmul.f32 %v984, %v984
          %v1049 = vmul.f32 %v985, %v985
          %v1050 = vmul.f32 %v986, %v986
          %v1051 = vmul.f32 %v987, %v987
          %v1052 = vmul.f32 %v988, %v988
          %v1053 = vmul.f32 %v989, %v989
          %v1054 = vmul.f32 %v990, %v990
          %v1055 = vmul.f32 %v991, %v991
          %v1056 = vmul.f32 %v992, %v992
          %v1057 = vmul.f32 %v993, %v993
          %v1058 = vmul.f32 %v994, %v994
          %v1059 = vmul.f32 %v995, %v995
          %v1060 = vmul.f32 %v996, %v996
          %v1061 = vmul.f32 %v997, %v997
          %v1062 = vmul.f32 %v998, %v998
          %v1063 = vmul.f32 %v999, %v999
          %v1064 = vmul.f32 %v1000, %v1000
          %v1065 = vmul.f32 %v1001, %v1001
          %v1066 = vmul.f32 %v1002, %v1002
          %v1067 = vmul.f32 %v1003, %v1003
          %v1068 = vmul.f32 %v1004, %v1004
          %v1069 = vmul.f32 %v1005, %v1005
          %v1070 = vmul.f32 %v1006, %v1006
          %v1071 = vmul.f32 %v1007, %v1007
          %v1072 = vmul.f32 %v1008, %v1008
          %v1073 = vmul.f32 %v1009, %v1009
          %v1074 = vmul.f32 %v1010, %v1010
          %v1075 = vmul.f32 %v1011, %v1011
          %v1076 = vmul.f32 %v1012, %v1012
          %v1077 = vmul.f32 %v1013, %v1013
          %v1078 = vmul.f32 %v1014, %v1014
          %v1079 = vmul.f32 %v1015, %v1015
          %v1080 = vmul.f32 %v1016, %v1016
          %v1081 = vmul.f32 %v1017, %v1017
          %v1082 = vmul.f32 %v1018, %v1018
          %v1083 = vmul.f32 %v1019, %v1019
          %v1084 = vmul.f32 %v1020, %v1020
          %v1085 = vmul.f32 %v1021, %v1021
          %v1086 = vmul.f32 %v1022, %v1022
          %v1087 = vmul.f32 %v1023, %v1023
          %v1088 = vmul.f32 %v896, %v896
          %v1089 = vmul.f32 %v897, %v897
          %v1090 = vmul.f32 %v898, %v898
          %v1091 = vmul.f32 %v899, %v899
          %v1092 = vmul.f32 %v900, %v900
          %v1093 = vmul.f32 %v901, %v901
          %v1094 = vmul.f32 %v902, %v902
          %v1095 = vmul.f32 %v903, %v903
          %v1096 = vmul.f32 %v904, %v904
          %v1097 = vmul.f32 %v905, %v905
          %v1098 = vmul.f32 %v906, %v906
          %v1099 = vmul.f32 %v907, %v907
          %v1100 = vmul.f32 %v908, %v908
          %v1101 = vmul.f32 %v909, %v909
          %v1102 = vmul.f32 %v910, %v910
          %v1103 = vmul.f32 %v911, %v911
          %v1104 = vmul.f32 %v912, %v912
          %v1105 = vmul.f32 %v913, %v913
          %v1106 = vmul.f32 %v914, %v914
          %v1107 = vmul.f32 %v915, %v915
          %v1108 = vmul.f32 %v916, %v916
          %v1109 = vmul.f32 %v917, %v917
          %v1110 = vmul.f32 %v918, %v918
          %v1111 = vmul.f32 %v919, %v919
          %v1112 = vmul.f32 %v920, %v920
          %v1113 = vmul.f32 %v921, %v921
          %v1114 = vmul.f32 %v922, %v922
          %v1115 = vmul.f32 %v923, %v923
          %v1116 = vmul.f32 %v924, %v924
          %v1117 = vmul.f32 %v925, %v925
          %v1118 = vmul.f32 %v926, %v926
          %v1119 = vmul.f32 %v927, %v927
          %v1120 = vmul.f32 %v928, %v928
          %v1121 = vmul.f32 %v929, %v929
          %v1122 = vmul.f32 %v930, %v930
          %v1123 = vmul.f32 %v931, %v931
          %v1124 = vmul.f32 %v932, %v932
          %v1125 = vmul.f32 %v933, %v933
          %v1126 = vmul.f32 %v934, %v934
          %v1127 = vmul.f32 %v935, %v935
          %v1128 = vmul.f32 %v936, %v936
          %v1129 = vmul.f32 %v937, %v937
          %v1130 = vmul.f32 %v938, %v938
          %v1131 = vmul.f32 %v939, %v939
          %v1132 = vmul.f32 %v940, %v940
          %v1133 = vmul.f32 %v941, %v941
          %v1134 = vmul.f32 %v942, %v942
          %v1135 = vmul.f32 %v943, %v943
          %v1136 = vmul.f32 %v944, %v944
          %v1137 = vmul.f32 %v945, %v945
          %v1138 = vmul.f32 %v946, %v946
          %v1139 = vmul.f32 %v947, %v947
          %v1140 = vmul.f32 %v948, %v948
          %v1141 = vmul.f32 %v949, %v949
          %v1142 = vmul.f32 %v950, %v950
          %v1143 = vmul.f32 %v951, %v951
          %v1144 = vmul.f32 %v952, %v952
          %v1145 = vmul.f32 %v953, %v953
          %v1146 = vmul.f32 %v954, %v954
          %v1147 = vmul.f32 %v955, %v955
          %v1148 = vmul.f32 %v956, %v956
          %v1149 = vmul.f32 %v957, %v957
          %v1150 = vmul.f32 %v958, %v958
          %v1151 = vmul.f32 %v959, %v959
          %v1152 = vrcp.pop %v1088
          %v1153 = vrcp.pop %v1089
          %v1154 = vrcp.pop %v1090
          %v1155 = vrcp.pop %v1091
          %v1156 = vrcp.pop %v1092
          %v1157 = vrcp.pop %v1093
          %v1158 = vrcp.pop %v1094
          %v1159 = vrcp.pop %v1095
          %v1160 = vrcp.pop %v1096
          %v1161 = vrcp.pop %v1097
          %v1162 = vrcp.pop %v1098
          %v1163 = vrcp.pop %v1099
          %v1164 = vrcp.pop %v1100
          %v1165 = vrcp.pop %v1101
          %v1166 = vrcp.pop %v1102
          %v1167 = vrcp.pop %v1103
          %v1168 = vrcp.pop %v1104
          %v1169 = vrcp.pop %v1105
          %v1170 = vrcp.pop %v1106
          %v1171 = vrcp.pop %v1107
          %v1172 = vrcp.pop %v1108
          %v1173 = vrcp.pop %v1109
          %v1174 = vrcp.pop %v1110
          %v1175 = vrcp.pop %v1111
          %v1176 = vrcp.pop %v1112
          %v1177 = vrcp.pop %v1113
          %v1178 = vrcp.pop %v1114
          %v1179 = vrcp.pop %v1115
          %v1180 = vrcp.pop %v1116
          %v1181 = vrcp.pop %v1117
          %v1182 = vrcp.pop %v1118
          %v1183 = vrcp.pop %v1119
          %v1184 = vrcp.pop %v1120
          %v1185 = vrcp.pop %v1121
          %v1186 = vrcp.pop %v1122
          %v1187 = vrcp.pop %v1123
          %v1188 = vrcp.pop %v1124
          %v1189 = vrcp.pop %v1125
          %v1190 = vrcp.pop %v1126
          %v1191 = vrcp.pop %v1127
          %v1192 = vrcp.pop %v1128
          %v1193 = vrcp.pop %v1129
          %v1194 = vrcp.pop %v1130
          %v1195 = vrcp.pop %v1131
          %v1196 = vrcp.pop %v1132
          %v1197 = vrcp.pop %v1133
          %v1198 = vrcp.pop %v1134
          %v1199 = vrcp.pop %v1135
          %v1200 = vrcp.pop %v1136
          %v1201 = vrcp.pop %v1137
          %v1202 = vrcp.pop %v1138
          %v1203 = vrcp.pop %v1139
          %v1204 = vrcp.pop %v1140
          %v1205 = vrcp.pop %v1141
          %v1206 = vrcp.pop %v1142
          %v1207 = vrcp.pop %v1143
          %v1208 = vrcp.pop %v1144
          %v1209 = vrcp.pop %v1145
          %v1210 = vrcp.pop %v1146
          %v1211 = vrcp.pop %v1147
          %v1212 = vrcp.pop %v1148
          %v1213 = vrcp.pop %v1149
          %v1214 = vrcp.pop %v1150
          %v1215 = vrcp.pop %v1151
          %v1216 = vmul.f32 %v1024, -0.5
          %v1217 = vmul.f32 %v1025, -0.5
          %v1218 = vmul.f32 %v1026, -0.5
          %v1219 = vmul.f32 %v1027, -0.5
          %v1220 = vmul.f32 %v1028, -0.5
          %v1221 = vmul.f32 %v1029, -0.5
          %v1222 = vmul.f32 %v1030, -0.5
          %v1223 = vmul.f32 %v1031, -0.5
          %v1224 = vmul.f32 %v1032, -0.5
          %v1225 = vmul.f32 %v1033, -0.5
          %v1226 = vmul.f32 %v1034, -0.5
          %v1227 = vmul.f32 %v1035, -0.5
          %v1228 = vmul.f32 %v1036, -0.5
          %v1229 = vmul.f32 %v1037, -0.5
          %v1230 = vmul.f32 %v1038, -0.5
          %v1231 = vmul.f32 %v1039, -0.5
          %v1232 = vmul.f32 %v1040, -0.5
          %v1233 = vmul.f32 %v1041, -0.5
          %v1234 = vmul.f32 %v1042, -0.5
          %v1235 = vmul.f32 %v1043, -0.5
          %v1236 = vmul.f32 %v1044, -0.5
          %v1237 = vmul.f32 %v1045, -0.5
          %v1238 = vmul.f32 %v1046, -0.5
          %v1239 = vmul.f32 %v1047, -0.5
          %v1240 = vmul.f32 %v1048, -0.5
          %v1241 = vmul.f32 %v1049, -0.5
          %v1242 = vmul.f32 %v1050, -0.5
          %v1243 = vmul.f32 %v1051, -0.5
          %v1244 = vmul.f32 %v1052, -0.5
          %v1245 = vmul.f32 %v1053, -0.5
          %v1246 = vmul.f32 %v1054, -0.5
          %v1247 = vmul.f32 %v1055, -0.5
          %v1248 = vmul.f32 %v1056, -0.5
          %v1249 = vmul.f32 %v1057, -0.5
          %v1250 = vmul.f32 %v1058, -0.5
          %v1251 = vmul.f32 %v1059, -0.5
          %v1252 = vmul.f32 %v1060, -0.5
          %v1253 = vmul.f32 %v1061, -0.5
          %v1254 = vmul.f32 %v1062, -0.5
          %v1255 = vmul.f32 %v1063, -0.5
          %v1256 = vmul.f32 %v1064, -0.5
          %v1257 = vmul.f32 %v1065, -0.5
          %v1258 = vmul.f32 %v1066, -0.5
          %v1259 = vmul.f32 %v1067, -0.5
          %v1260 = vmul.f32 %v1068, -0.5
          %v1261 = vmul.f32 %v1069, -0.5
          %v1262 = vmul.f32 %v1070, -0.5
          %v1263 = vmul.f32 %v1071, -0.5
          %v1264 = vmul.f32 %v1072, -0.5
          %v1265 = vmul.f32 %v1073, -0.5
          %v1266 = vmul.f32 %v1074, -0.5
          %v1267 = vmul.f32 %v1075, -0.5
          %v1268 = vmul.f32 %v1076, -0.5
          %v1269 = vmul.f32 %v1077, -0.5
          %v1270 = vmul.f32 %v1078, -0.5
          %v1271 = vmul.f32 %v1079, -0.5
          %v1272 = vmul.f32 %v1080, -0.5
          %v1273 = vmul.f32 %v1081, -0.5
          %v1274 = vmul.f32 %v1082, -0.5
          %v1275 = vmul.f32 %v1083, -0.5
          %v1276 = vmul.f32 %v1084, -0.5
          %v1277 = vmul.f32 %v1085, -0.5
          %v1278 = vmul.f32 %v1086, -0.5
          %v1279 = vmul.f32 %v1087, -0.5
          %v1280 = vmul.f32 %v1216, %v1152
          %v1281 = vmul.f32 %v1217, %v1153
          %v1282 = vmul.f32 %v1218, %v1154
          %v1283 = vmul.f32 %v1219, %v1155
          %v1284 = vmul.f32 %v1220, %v1156
          %v1285 = vmul.f32 %v1221, %v1157
          %v1286 = vmul.f32 %v1222, %v1158
          %v1287 = vmul.f32 %v1223, %v1159
          %v1288 = vmul.f32 %v1224, %v1160
          %v1289 = vmul.f32 %v1225, %v1161
          %v1290 = vmul.f32 %v1226, %v1162
          %v1291 = vmul.f32 %v1227, %v1163
          %v1292 = vmul.f32 %v1228, %v1164
          %v1293 = vmul.f32 %v1229, %v1165
          %v1294 = vmul.f32 %v1230, %v1166
          %v1295 = vmul.f32 %v1231, %v1167
          %v1296 = vmul.f32 %v1232, %v1168
          %v1297 = vmul.f32 %v1233, %v1169
          %v1298 = vmul.f32 %v1234, %v1170
          %v1299 = vmul.f32 %v1235, %v1171
          %v1300 = vmul.f32 %v1236, %v1172
          %v1301 = vmul.f32 %v1237, %v1173
          %v1302 = vmul.f32 %v1238, %v1174
          %v1303 = vmul.f32 %v1239, %v1175
          %v1304 = vmul.f32 %v1240, %v1176
          %v1305 = vmul.f32 %v1241, %v1177
          %v1306 = vmul.f32 %v1242, %v1178
          %v1307 = vmul.f32 %v1243, %v1179
          %v1308 = vmul.f32 %v1244, %v1180
          %v1309 = vmul.f32 %v1245, %v1181
          %v1310 = vmul.f32 %v1246, %v1182
          %v1311 = vmul.f32 %v1247, %v1183
          %v1312 = vmul.f32 %v1248, %v1184
          %v1313 = vmul.f32 %v1249, %v1185
          %v1314 = vmul.f32 %v1250, %v1186
          %v1315 = vmul.f32 %v1251, %v1187
          %v1316 = vmul.f32 %v1252, %v1188
          %v1317 = vmul.f32 %v1253, %v1189
          %v1318 = vmul.f32 %v1254, %v1190
          %v1319 = vmul.f32 %v1255, %v1191
          %v1320 = vmul.f32 %v1256, %v1192
          %v1321 = vmul.f32 %v1257, %v1193
          %v1322 = vmul.f32 %v1258, %v1194
          %v1323 = vmul.f32 %v1259, %v1195
          %v1324 = vmul.f32 %v1260, %v1196
          %v1325 = vmul.f32 %v1261, %v1197
          %v1326 = vmul.f32 %v1262, %v1198
          %v1327 = vmul.f32 %v1263, %v1199
          %v1328 = vmul.f32 %v1264, %v1200
          %v1329 = vmul.f32 %v1265, %v1201
          %v1330 = vmul.f32 %v1266, %v1202
          %v1331 = vmul.f32 %v1267, %v1203
          %v1332 = vmul.f32 %v1268, %v1204
          %v1333 = vmul.f32 %v1269, %v1205
          %v1334 = vmul.f32 %v1270, %v1206
          %v1335 = vmul.f32 %v1271, %v1207
          %v1336 = vmul.f32 %v1272, %v1208
          %v1337 = vmul.f32 %v1273, %v1209
          %v1338 = vmul.f32 %v1274, %v1210
          %v1339 = vmul.f32 %v1275, %v1211
          %v1340 = vmul.f32 %v1276, %v1212
          %v1341 = vmul.f32 %v1277, %v1213
          %v1342 = vmul.f32 %v1278, %v1214
          %v1343 = vmul.f32 %v1279, %v1215
          %v1344 = vlog2.pop %v896
          %v1345 = vmul.f32 %v1344, 0.6931472
          %v1346 = vlog2.pop %v897
          %v1347 = vmul.f32 %v1346, 0.6931472
          %v1348 = vlog2.pop %v898
          %v1349 = vmul.f32 %v1348, 0.6931472
          %v1350 = vlog2.pop %v899
          %v1351 = vmul.f32 %v1350, 0.6931472
          %v1352 = vlog2.pop %v900
          %v1353 = vmul.f32 %v1352, 0.6931472
          %v1354 = vlog2.pop %v901
          %v1355 = vmul.f32 %v1354, 0.6931472
          %v1356 = vlog2.pop %v902
          %v1357 = vmul.f32 %v1356, 0.6931472
          %v1358 = vlog2.pop %v903
          %v1359 = vmul.f32 %v1358, 0.6931472
          %v1360 = vlog2.pop %v904
          %v1361 = vmul.f32 %v1360, 0.6931472
          %v1362 = vlog2.pop %v905
          %v1363 = vmul.f32 %v1362, 0.6931472
          %v1364 = vlog2.pop %v906
          %v1365 = vmul.f32 %v1364, 0.6931472
          %v1366 = vlog2.pop %v907
          %v1367 = vmul.f32 %v1366, 0.6931472
          %v1368 = vlog2.pop %v908
          %v1369 = vmul.f32 %v1368, 0.6931472
          %v1370 = vlog2.pop %v909
          %v1371 = vmul.f32 %v1370, 0.6931472
          %v1372 = vlog2.pop %v910
          %v1373 = vmul.f32 %v1372, 0.6931472
          %v1374 = vlog2.pop %v911
          %v1375 = vmul.f32 %v1374, 0.6931472
          %v1376 = vlog2.pop %v912
          %v1377 = vmul.f32 %v1376, 0.6931472
          %v1378 = vlog2.pop %v913
          %v1379 = vmul.f32 %v1378, 0.6931472
          %v1380 = vlog2.pop %v914
          %v1381 = vmul.f32 %v1380, 0.6931472
          %v1382 = vlog2.pop %v915
          %v1383 = vmul.f32 %v1382, 0.6931472
          %v1384 = vlog2.pop %v916
          %v1385 = vmul.f32 %v1384, 0.6931472
          %v1386 = vlog2.pop %v917
          %v1387 = vmul.f32 %v1386, 0.6931472
          %v1388 = vlog2.pop %v918
          %v1389 = vmul.f32 %v1388, 0.6931472
          %v1390 = vlog2.pop %v919
          %v1391 = vmul.f32 %v1390, 0.6931472
          %v1392 = vlog2.pop %v920
          %v1393 = vmul.f32 %v1392, 0.6931472
          %v1394 = vlog2.pop %v921
          %v1395 = vmul.f32 %v1394, 0.6931472
          %v1396 = vlog2.pop %v922
          %v1397 = vmul.f32 %v1396, 0.6931472
          %v1398 = vlog2.pop %v923
          %v1399 = vmul.f32 %v1398, 0.6931472
          %v1400 = vlog2.pop %v924
          %v1401 = vmul.f32 %v1400, 0.6931472
          %v1402 = vlog2.pop %v925
          %v1403 = vmul.f32 %v1402, 0.6931472
          %v1404 = vlog2.pop %v926
          %v1405 = vmul.f32 %v1404, 0.6931472
          %v1406 = vlog2.pop %v927
          %v1407 = vmul.f32 %v1406, 0.6931472
          %v1408 = vlog2.pop %v928
          %v1409 = vmul.f32 %v1408, 0.6931472
          %v1410 = vlog2.pop %v929
          %v1411 = vmul.f32 %v1410, 0.6931472
          %v1412 = vlog2.pop %v930
          %v1413 = vmul.f32 %v1412, 0.6931472
          %v1414 = vlog2.pop %v931
          %v1415 = vmul.f32 %v1414, 0.6931472
          %v1416 = vlog2.pop %v932
          %v1417 = vmul.f32 %v1416, 0.6931472
          %v1418 = vlog2.pop %v933
          %v1419 = vmul.f32 %v1418, 0.6931472
          %v1420 = vlog2.pop %v934
          %v1421 = vmul.f32 %v1420, 0.6931472
          %v1422 = vlog2.pop %v935
          %v1423 = vmul.f32 %v1422, 0.6931472
          %v1424 = vlog2.pop %v936
          %v1425 = vmul.f32 %v1424, 0.6931472
          %v1426 = vlog2.pop %v937
          %v1427 = vmul.f32 %v1426, 0.6931472
          %v1428 = vlog2.pop %v938
          %v1429 = vmul.f32 %v1428, 0.6931472
          %v1430 = vlog2.pop %v939
          %v1431 = vmul.f32 %v1430, 0.6931472
          %v1432 = vlog2.pop %v940
          %v1433 = vmul.f32 %v1432, 0.6931472
          %v1434 = vlog2.pop %v941
          %v1435 = vmul.f32 %v1434, 0.6931472
          %v1436 = vlog2.pop %v942
          %v1437 = vmul.f32 %v1436, 0.6931472
          %v1438 = vlog2.pop %v943
          %v1439 = vmul.f32 %v1438, 0.6931472
          %v1440 = vlog2.pop %v944
          %v1441 = vmul.f32 %v1440, 0.6931472
          %v1442 = vlog2.pop %v945
          %v1443 = vmul.f32 %v1442, 0.6931472
          %v1444 = vlog2.pop %v946
          %v1445 = vmul.f32 %v1444, 0.6931472
          %v1446 = vlog2.pop %v947
          %v1447 = vmul.f32 %v1446, 0.6931472
          %v1448 = vlog2.pop %v948
          %v1449 = vmul.f32 %v1448, 0.6931472
          %v1450 = vlog2.pop %v949
          %v1451 = vmul.f32 %v1450, 0.6931472
          %v1452 = vlog2.pop %v950
          %v1453 = vmul.f32 %v1452, 0.6931472
          %v1454 = vlog2.pop %v951
          %v1455 = vmul.f32 %v1454, 0.6931472
          %v1456 = vlog2.pop %v952
          %v1457 = vmul.f32 %v1456, 0.6931472
          %v1458 = vlog2.pop %v953
          %v1459 = vmul.f32 %v1458, 0.6931472
          %v1460 = vlog2.pop %v954
          %v1461 = vmul.f32 %v1460, 0.6931472
          %v1462 = vlog2.pop %v955
          %v1463 = vmul.f32 %v1462, 0.6931472
          %v1464 = vlog2.pop %v956
          %v1465 = vmul.f32 %v1464, 0.6931472
          %v1466 = vlog2.pop %v957
          %v1467 = vmul.f32 %v1466, 0.6931472
          %v1468 = vlog2.pop %v958
          %v1469 = vmul.f32 %v1468, 0.6931472
          %v1470 = vlog2.pop %v959
          %v1471 = vmul.f32 %v1470, 0.6931472
          %v1472 = vsub.f32 %v1280, %v1345
          %v1473 = vsub.f32 %v1281, %v1347
          %v1474 = vsub.f32 %v1282, %v1349
          %v1475 = vsub.f32 %v1283, %v1351
          %v1476 = vsub.f32 %v1284, %v1353
          %v1477 = vsub.f32 %v1285, %v1355
          %v1478 = vsub.f32 %v1286, %v1357
          %v1479 = vsub.f32 %v1287, %v1359
          %v1480 = vsub.f32 %v1288, %v1361
          %v1481 = vsub.f32 %v1289, %v1363
          %v1482 = vsub.f32 %v1290, %v1365
          %v1483 = vsub.f32 %v1291, %v1367
          %v1484 = vsub.f32 %v1292, %v1369
          %v1485 = vsub.f32 %v1293, %v1371
          %v1486 = vsub.f32 %v1294, %v1373
          %v1487 = vsub.f32 %v1295, %v1375
          %v1488 = vsub.f32 %v1296, %v1377
          %v1489 = vsub.f32 %v1297, %v1379
          %v1490 = vsub.f32 %v1298, %v1381
          %v1491 = vsub.f32 %v1299, %v1383
          %v1492 = vsub.f32 %v1300, %v1385
          %v1493 = vsub.f32 %v1301, %v1387
          %v1494 = vsub.f32 %v1302, %v1389
          %v1495 = vsub.f32 %v1303, %v1391
          %v1496 = vsub.f32 %v1304, %v1393
          %v1497 = vsub.f32 %v1305, %v1395
          %v1498 = vsub.f32 %v1306, %v1397
          %v1499 = vsub.f32 %v1307, %v1399
          %v1500 = vsub.f32 %v1308, %v1401
          %v1501 = vsub.f32 %v1309, %v1403
          %v1502 = vsub.f32 %v1310, %v1405
          %v1503 = vsub.f32 %v1311, %v1407
          %v1504 = vsub.f32 %v1312, %v1409
          %v1505 = vsub.f32 %v1313, %v1411
          %v1506 = vsub.f32 %v1314, %v1413
          %v1507 = vsub.f32 %v1315, %v1415
          %v1508 = vsub.f32 %v1316, %v1417
          %v1509 = vsub.f32 %v1317, %v1419
          %v1510 = vsub.f32 %v1318, %v1421
          %v1511 = vsub.f32 %v1319, %v1423
          %v1512 = vsub.f32 %v1320, %v1425
          %v1513 = vsub.f32 %v1321, %v1427
          %v1514 = vsub.f32 %v1322, %v1429
          %v1515 = vsub.f32 %v1323, %v1431
          %v1516 = vsub.f32 %v1324, %v1433
          %v1517 = vsub.f32 %v1325, %v1435
          %v1518 = vsub.f32 %v1326, %v1437
          %v1519 = vsub.f32 %v1327, %v1439
          %v1520 = vsub.f32 %v1328, %v1441
          %v1521 = vsub.f32 %v1329, %v1443
          %v1522 = vsub.f32 %v1330, %v1445
          %v1523 = vsub.f32 %v1331, %v1447
          %v1524 = vsub.f32 %v1332, %v1449
          %v1525 = vsub.f32 %v1333, %v1451
          %v1526 = vsub.f32 %v1334, %v1453
          %v1527 = vsub.f32 %v1335, %v1455
          %v1528 = vsub.f32 %v1336, %v1457
          %v1529 = vsub.f32 %v1337, %v1459
          %v1530 = vsub.f32 %v1338, %v1461
          %v1531 = vsub.f32 %v1339, %v1463
          %v1532 = vsub.f32 %v1340, %v1465
          %v1533 = vsub.f32 %v1341, %v1467
          %v1534 = vsub.f32 %v1342, %v1469
          %v1535 = vsub.f32 %v1343, %v1471
          %v1536 = vadd.f32 %v1472, %v1476
          %v1537 = vadd.f32 %v1536, %v1480
          %v1538 = vadd.f32 %v1537, %v1484
          %v1539 = vadd.f32 %v1538, %v1488
          %v1540 = vadd.f32 %v1539, %v1492
          %v1541 = vadd.f32 %v1540, %v1496
          %v1542 = vadd.f32 %v1541, %v1500
          %v1543 = vadd.f32 %v1542, %v1504
          %v1544 = vadd.f32 %v1543, %v1508
          %v1545 = vadd.f32 %v1544, %v1512
          %v1546 = vadd.f32 %v1545, %v1516
          %v1547 = vadd.f32 %v1546, %v1520
          %v1548 = vadd.f32 %v1547, %v1524
          %v1549 = vadd.f32 %v1548, %v1528
          %v1550 = vadd.f32 %v1549, %v1532
          %v1551 = vadd.f32 %v1473, %v1477
          %v1552 = vadd.f32 %v1551, %v1481
          %v1553 = vadd.f32 %v1552, %v1485
          %v1554 = vadd.f32 %v1553, %v1489
          %v1555 = vadd.f32 %v1554, %v1493
          %v1556 = vadd.f32 %v1555, %v1497
          %v1557 = vadd.f32 %v1556, %v1501
          %v1558 = vadd.f32 %v1557, %v1505
          %v1559 = vadd.f32 %v1558, %v1509
          %v1560 = vadd.f32 %v1559, %v1513
          %v1561 = vadd.f32 %v1560, %v1517
          %v1562 = vadd.f32 %v1561, %v1521
          %v1563 = vadd.f32 %v1562, %v1525
          %v1564 = vadd.f32 %v1563, %v1529
          %v1565 = vadd.f32 %v1564, %v1533
          %v1566 = vadd.f32 %v1474, %v1478
          %v1567 = vadd.f32 %v1566, %v1482
          %v1568 = vadd.f32 %v1567, %v1486
          %v1569 = vadd.f32 %v1568, %v1490
          %v1570 = vadd.f32 %v1569, %v1494
          %v1571 = vadd.f32 %v1570, %v1498
          %v1572 = vadd.f32 %v1571, %v1502
          %v1573 = vadd.f32 %v1572, %v1506
          %v1574 = vadd.f32 %v1573, %v1510
          %v1575 = vadd.f32 %v1574, %v1514
          %v1576 = vadd.f32 %v1575, %v1518
          %v1577 = vadd.f32 %v1576, %v1522
          %v1578 = vadd.f32 %v1577, %v1526
          %v1579 = vadd.f32 %v1578, %v1530
          %v1580 = vadd.f32 %v1579, %v1534
          %v1581 = vadd.f32 %v1475, %v1479
          %v1582 = vadd.f32 %v1581, %v1483
          %v1583 = vadd.f32 %v1582, %v1487
          %v1584 = vadd.f32 %v1583, %v1491
          %v1585 = vadd.f32 %v1584, %v1495
          %v1586 = vadd.f32 %v1585, %v1499
          %v1587 = vadd.f32 %v1586, %v1503
          %v1588 = vadd.f32 %v1587, %v1507
          %v1589 = vadd.f32 %v1588, %v1511
          %v1590 = vadd.f32 %v1589, %v1515
          %v1591 = vadd.f32 %v1590, %v1519
          %v1592 = vadd.f32 %v1591, %v1523
          %v1593 = vadd.f32 %v1592, %v1527
          %v1594 = vadd.f32 %v1593, %v1531
          %v1595 = vadd.f32 %v1594, %v1535
          %v1596 = vadd.f32 %v1024, %v1028
          %v1597 = vadd.f32 %v1596, %v1032
          %v1598 = vadd.f32 %v1597, %v1036
          %v1599 = vadd.f32 %v1598, %v1040
          %v1600 = vadd.f32 %v1599, %v1044
          %v1601 = vadd.f32 %v1600, %v1048
          %v1602 = vadd.f32 %v1601, %v1052
          %v1603 = vadd.f32 %v1602, %v1056
          %v1604 = vadd.f32 %v1603, %v1060
          %v1605 = vadd.f32 %v1604, %v1064
          %v1606 = vadd.f32 %v1605, %v1068
          %v1607 = vadd.f32 %v1606, %v1072
          %v1608 = vadd.f32 %v1607, %v1076
          %v1609 = vadd.f32 %v1608, %v1080
          %v1610 = vadd.f32 %v1609, %v1084
          %v1611 = vadd.f32 %v1025, %v1029
          %v1612 = vadd.f32 %v1611, %v1033
          %v1613 = vadd.f32 %v1612, %v1037
          %v1614 = vadd.f32 %v1613, %v1041
          %v1615 = vadd.f32 %v1614, %v1045
          %v1616 = vadd.f32 %v1615, %v1049
          %v1617 = vadd.f32 %v1616, %v1053
          %v1618 = vadd.f32 %v1617, %v1057
          %v1619 = vadd.f32 %v1618, %v1061
          %v1620 = vadd.f32 %v1619, %v1065
          %v1621 = vadd.f32 %v1620, %v1069
          %v1622 = vadd.f32 %v1621, %v1073
          %v1623 = vadd.f32 %v1622, %v1077
          %v1624 = vadd.f32 %v1623, %v1081
          %v1625 = vadd.f32 %v1624, %v1085
          %v1626 = vadd.f32 %v1026, %v1030
          %v1627 = vadd.f32 %v1626, %v1034
          %v1628 = vadd.f32 %v1627, %v1038
          %v1629 = vadd.f32 %v1628, %v1042
          %v1630 = vadd.f32 %v1629, %v1046
          %v1631 = vadd.f32 %v1630, %v1050
          %v1632 = vadd.f32 %v1631, %v1054
          %v1633 = vadd.f32 %v1632, %v1058
          %v1634 = vadd.f32 %v1633, %v1062
          %v1635 = vadd.f32 %v1634, %v1066
          %v1636 = vadd.f32 %v1635, %v1070
          %v1637 = vadd.f32 %v1636, %v1074
          %v1638 = vadd.f32 %v1637, %v1078
          %v1639 = vadd.f32 %v1638, %v1082
          %v1640 = vadd.f32 %v1639, %v1086
          %v1641 = vadd.f32 %v1027, %v1031
          %v1642 = vadd.f32 %v1641, %v1035
          %v1643 = vadd.f32 %v1642, %v1039
          %v1644 = vadd.f32 %v1643, %v1043
          %v1645 = vadd.f32 %v1644, %v1047
          %v1646 = vadd.f32 %v1645, %v1051
          %v1647 = vadd.f32 %v1646, %v1055
          %v1648 = vadd.f32 %v1647, %v1059
          %v1649 = vadd.f32 %v1648, %v1063
          %v1650 = vadd.f32 %v1649, %v1067
          %v1651 = vadd.f32 %v1650, %v1071
          %v1652 = vadd.f32 %v1651, %v1075
          %v1653 = vadd.f32 %v1652, %v1079
          %v1654 = vadd.f32 %v1653, %v1083
          %v1655 = vadd.f32 %v1654, %v1087
          %v1656 = vld [vmem:[%s334] sm:$0xff]
          %v1657 = vadd.f32 %v1550, %v1565
          %v1658 = vadd.f32 %v1657, %v1580
          %v1659 = vadd.f32 %v1658, %v1595
          %v1660 = vadd.f32 %v1656, %v1659
          %1661 = vst [vmem:[%s334] sm:$0xff] %v1660
          %v1662 = vld [vmem:[%s341] sm:$0xff]
          %v1663 = vadd.f32 %v1610, %v1625
          %v1664 = vadd.f32 %v1663, %v1640
          %v1665 = vadd.f32 %v1664, %v1655
          %v1666 = vadd.f32 %v1662, %v1665
          %1667 = vst [vmem:[%s341] sm:$0xff] %v1666
        $region48: #{tpu_custom_call.1} parent=31 // pred_fallthru
          _
        %s1668 = sand.u32 %s144, 1
        %s1669 = scalar_lea.sflag [#allocation4], %s1668
        %s1670 = sand.u32 %s144, 1
        %s1671 = smul.addr %s1670, 8
        %s1672 = scalar_lea.vmem [#allocation7], %s1671
        %s1673 = sand.u32 %s170, 1
        %s1674 = scalar_lea.sflag [#allocation9], %s1673
        %s1675 = sand.u32 %s170, 1
        %s1676 = smul.addr %s1675, 8
        %s1677 = scalar_lea.vmem [#allocation8], %s1676
        // Predicated region
        $region49: #{tpu_custom_call.1} parent=31 // pred_check
          %p1678 = pneg %p154
        $region50: #{tpu_custom_call.1} parent=31 // pred_check_branch
          %1680 = sbr.rel (%p1678) target = $region52
        $region51: #{tpu_custom_call.1} parent=31 // pred_region
          %s1682 = ssub.s32 128, 128
          %1683 = vsyncadd %s1669, %s1682
          %s1684 = smul.addr %s32, 128
          %s1685 = scalar_lea.hbm %s3, %s1684
          %s1687 = sshll.u32 %s1672, 4
          %s1688 = int_to_ptr.vmem [resolvable:$true] %s1687
          %1690 = dma.vmem_to_hbm [thread:$0]  %s1688, 128, %s1685, %s1669
        $region52: #{tpu_custom_call.1} parent=31 // pred_fallthru
          _
        // Predicated region
        $region53: #{tpu_custom_call.1} parent=31 // pred_check
          %p1691 = pneg %p180
        $region54: #{tpu_custom_call.1} parent=31 // pred_check_branch
          %1693 = sbr.rel (%p1691) target = $region56
        $region55: #{tpu_custom_call.1} parent=31 // pred_region
          %s1695 = ssub.s32 128, 128
          %1696 = vsyncadd %s1674, %s1695
          %s1697 = smul.addr %s32, 128
          %s1698 = scalar_lea.hbm %s4, %s1697
          %s1700 = sshll.u32 %s1677, 4
          %s1701 = int_to_ptr.vmem [resolvable:$true] %s1700
          %1703 = dma.vmem_to_hbm [thread:$0]  %s1701, 128, %s1698, %s1674
        $region56: #{tpu_custom_call.1} parent=31 // pred_fallthru
          _
      $region32: #{tpu_custom_call.1} parent=5 // pred_fallthru
        _
      %p1704 = scmp.le.s32.totalorder 2, %s23
      // Predicated region
      $region57: #{tpu_custom_call.1} parent=5 // pred_check
        %p1705 = pneg %p1704
      $region58: #{tpu_custom_call.1} parent=5 // pred_check_branch
        %1707 = sbr.rel (%p1705) target = $region60
      $region59: #{tpu_custom_call.1} parent=5 // pred_region
        %s1708 = ssub.s32 %s23, 2
        // Predicated region
        $region61: #{tpu_custom_call.1} parent=59 // pred_check
          %p1709 = pneg %p160
        $region62: #{tpu_custom_call.1} parent=59 // pred_check_branch
          %1711 = sbr.rel (%p1709) target = $region64
        $region63: #{tpu_custom_call.1} parent=59 // pred_region
          %s1712 = sand.u32 %s145, 1
          %s1713 = scalar_lea.sflag [#allocation4], %s1712
          %s1714 = sand.u32 %s145, 1
          %s1715 = smul.addr %s1714, 8
          %s1716 = scalar_lea.vmem [#allocation7], %s1715
          %1717 = dma.done %s1713, 128
        $region64: #{tpu_custom_call.1} parent=59 // pred_fallthru
          _
        // Predicated region
        $region65: #{tpu_custom_call.1} parent=59 // pred_check
          %p1718 = pneg %p186
        $region66: #{tpu_custom_call.1} parent=59 // pred_check_branch
          %1720 = sbr.rel (%p1718) target = $region68
        $region67: #{tpu_custom_call.1} parent=59 // pred_region
          %s1721 = sand.u32 %s171, 1
          %s1722 = scalar_lea.sflag [#allocation9], %s1721
          %s1723 = sand.u32 %s171, 1
          %s1724 = smul.addr %s1723, 8
          %s1725 = scalar_lea.vmem [#allocation8], %s1724
          %1726 = dma.done %s1722, 128
        $region68: #{tpu_custom_call.1} parent=59 // pred_fallthru
          _
      $region60: #{tpu_custom_call.1} parent=5 // pred_fallthru
        _
    $region6: #{tpu_custom_call.1} parent=1 // loop_footer
      %s27 = sadd.s32 1, %s23
    $region7: #{tpu_custom_call.1} parent=1 // loop_footer_branch
      %22 = sbr.rel target = $region3
    $region8: #{tpu_custom_call.1} parent=1 // loop_exit
      _
    %1727 = vsyncpa [#allocation3], 1
    %s1728 = scalar_lea.sflag [#allocation3], 1
    %1729 = vsyncpa %s1728, 1
    %1730 = vsyncpa [#allocation6], 1
    %s1731 = scalar_lea.sflag [#allocation6], 1
    %1732 = vsyncpa %s1731, 1
    %1733 = vsyncpa [#allocation4], 1
    %s1734 = scalar_lea.sflag [#allocation4], 1
    %1735 = vsyncpa %s1734, 1
    %1736 = vsyncpa [#allocation9], 1
    %s1737 = scalar_lea.sflag [#allocation9], 1
    %1738 = vsyncpa %s1737, 1

</llo_original>
